<compile_context>
chip_gen: v7x
topology: tpu7x:2x2x1
jax: 0.10.0
libtpu: 0.0.40
codegen_flags: <defaults>
</compile_context>

<pallas_src>
import functools

import jax
import jax.numpy as jnp
from jax.experimental import pallas as pl
from jax.experimental.pallas import tpu as pltpu

LANE = 128


def _round_up(n, m):
    return ((n + m - 1) // m) * m


# ----------------------------------------------------------------------------
# Kernel
# ----------------------------------------------------------------------------
def _block_kernel(
    x_ref,        # (TM, in_p)              bf16
    wx_ref,       # (in_p, out_p + hid_p)   bf16  [w_shortcut | w_conv1] (BN folded)
    wbr_ref,      # (hid_p, 2*hid_p)        bf16  [wb1 | wb2]            (BN folded)
    wc_ref,       # (2*hid_p, out_p)        bf16  combine                (BN folded)
    wse1_ref,     # (out_p, se_p)           bf16
    wse2_ref,     # (se_p, out_p)           bf16
    bias_ref,     # (8, bias_w)             f32   packed bias rows
    o_ref,        # (TM, out_p)             f32/bf16
    id_ref,       # (TM, out_p)             f32   VMEM scratch (shortcut result)
    *, hid_p, out_p, se_p,
):
    x = x_ref[...]  # bf16

    # Packed bias rows (f32):
    b_sc = bias_ref[0:1, :out_p]
    b1 = bias_ref[1:2, :hid_p]
    bbr = bias_ref[2:3, :2 * hid_p]          # [bb1 | bb2]
    bc = bias_ref[3:4, :out_p]
    bse1 = bias_ref[4:5, :se_p]
    bse2 = bias_ref[5:6, :out_p]

    # --- fused x stage: one MXU launch for shortcut + conv1 ------------------
    xw = jnp.dot(x, wx_ref[...], preferred_element_type=jnp.float32)
    # shortcut(x): park in VMEM scratch to keep the vreg working set small.
    id_ref[...] = xw[:, :out_p] + b_sc
    # conv1(x): Linear -> BN (folded) -> ReLU
    h = jnp.maximum(xw[:, out_p:] + b1, 0.0).astype(jnp.bfloat16)

    # --- fused branch stage: h @ [wb1 | wb2] ---------------------------------
    hb = jnp.dot(h, wbr_ref[...], preferred_element_type=jnp.float32) + bbr
    hb = jnp.maximum(hb, 0.0).astype(jnp.bfloat16)   # [br1 | br2], adjacent lanes

    # combine(cat([br1, br2])): single full-depth (K = 2*hid_p) matmul.
    comb = jnp.dot(hb, wc_ref[...], preferred_element_type=jnp.float32) + bc

    # --- squeeze-excitation: Linear -> ReLU -> Linear -> Sigmoid -------------
    comb_bf = comb.astype(jnp.bfloat16)
    se_h = jnp.dot(comb_bf, wse1_ref[...], preferred_element_type=jnp.float32) + bse1
    se_h = jnp.maximum(se_h, 0.0).astype(jnp.bfloat16)
    se_logits = jnp.dot(se_h, wse2_ref[...], preferred_element_type=jnp.float32) + bse2
    # sigmoid via EUP: exp(-x) then approximate reciprocal (both off the VALU).
    se_w = pl.reciprocal(1.0 + jnp.exp(-se_logits), approx=True)

    # gate, residual add (reload shortcut from VMEM), final ReLU
    out = comb * se_w + id_ref[...]
    o_ref[...] = jnp.maximum(out, 0.0).astype(o_ref.dtype)


# ----------------------------------------------------------------------------
# Wrapper: pad to lane-dense shapes, pre-fuse/cast weights, pack biases,
# tile the batch axis.
# ----------------------------------------------------------------------------
def _pad2(a, rows, cols):
    r, c = a.shape
    return jnp.pad(a, ((0, rows - r), (0, cols - c)))


def prepare_operands(params, in_features, out_features):
    """Pad feature dims to 128, pre-fuse weights, cast to bf16, pack biases."""
    hidden = out_features // 4
    se_hidden = max(out_features // 16, 1)
    in_p = _round_up(in_features, LANE)
    hid_p = _round_up(hidden, LANE)
    out_p = _round_up(out_features, LANE)
    se_p = _round_up(se_hidden, LANE)
    bias_w = max(out_p, 2 * hid_p)

    bf = jnp.bfloat16
    # Fused x-stage weight: [w_shortcut | w_conv1]  -> (in_p, out_p + hid_p)
    w_x = jnp.concatenate(
        [_pad2(params["w_sc"], in_p, out_p), _pad2(params["w1"], in_p, hid_p)],
        axis=1).astype(bf)
    # Fused branch weight: [wb1 | wb2]  -> (hid_p, 2*hid_p)
    w_br = jnp.concatenate(
        [_pad2(params["wb1"], hid_p, hid_p), _pad2(params["wb2"], hid_p, hid_p)],
        axis=1).astype(bf)
    # Combine weight re-padded so its K axis matches the [br1 | br2] lane layout.
    w_c = jnp.concatenate(
        [_pad2(params["wc"][:hidden], hid_p, out_p),
         _pad2(params["wc"][hidden:], hid_p, out_p)],
        axis=0).astype(bf)
    weights = dict(
        w_x=w_x, w_br=w_br, w_c=w_c,
        wse1=_pad2(params["wse1"], out_p, se_p).astype(bf),
        wse2=_pad2(params["wse2"], se_p, out_p).astype(bf),
    )

    def _row(b):
        b = jnp.asarray(b, jnp.float32).reshape(1, -1)
        return jnp.pad(b, ((0, 0), (0, bias_w - b.shape[1])))

    # Branch bias row laid out as [bb1 (hid_p lanes) | bb2 (hid_p lanes)].
    bb1p = jnp.pad(jnp.asarray(params["bb1"], jnp.float32).reshape(1, -1),
                   ((0, 0), (0, hid_p - hidden)))
    bb2p = jnp.pad(jnp.asarray(params["bb2"], jnp.float32).reshape(1, -1),
                   ((0, 0), (0, hid_p - hidden)))
    row_bb = jnp.pad(jnp.concatenate([bb1p, bb2p], axis=1),
                     ((0, 0), (0, bias_w - 2 * hid_p)))

    bias = jnp.concatenate([
        _row(params["b_sc"]),    # 0
        _row(params["b1"]),      # 1
        row_bb,                  # 2
        _row(params["bc"]),      # 3
        _row(params["bse1"]),    # 4
        _row(params["bse2"]),    # 5
        jnp.zeros((2, bias_w), jnp.float32),   # pad to 8 sublanes
    ], axis=0)  # (8, bias_w)

    dims = dict(in_p=in_p, hid_p=hid_p, out_p=out_p, se_p=se_p, bias_w=bias_w,
                in_features=in_features, out_features=out_features)
    return weights, bias, dims


def enhanced_residual_block(x, weights, bias, dims, tm=512, out_dtype=jnp.float32):
    """x: (B, in_features). Returns (B, out_features) in `out_dtype`."""
    B = x.shape[0]
    in_p, hid_p, out_p, se_p = dims["in_p"], dims["hid_p"], dims["out_p"], dims["se_p"]

    # Batch tile: keep >=2 grid steps whenever the padded batch allows it so the
    # "parallel" grid axis can shard across both v7x TensorCores.
    Bp0 = _round_up(B, 16)
    TM = min(tm, Bp0)
    if Bp0 >= 32:
        TM = min(TM, _round_up((Bp0 + 1) // 2, 16))
    Bp = _round_up(B, TM)

    # Conditional cast/pad of x (skip the extra HBM round-trip when possible).
    xp = x if x.dtype == jnp.bfloat16 else x.astype(jnp.bfloat16)
    pad_r, pad_c = Bp - B, in_p - xp.shape[1]
    if pad_r or pad_c:
        xp = jnp.pad(xp, ((0, pad_r), (0, pad_c)))

    weight_list = [weights[k] for k in ("w_x", "w_br", "w_c", "wse1", "wse2")]

    # Generation-aware VMEM budget (no double counting of resident weights).
    try:
        vmem_cap = int(pltpu.get_tpu_info().vmem_capacity_bytes)
    except Exception:
        vmem_cap = 64 * 1024 * 1024
    headroom = 8 * 1024 * 1024 if vmem_cap <= 64 * 1024 * 1024 else 24 * 1024 * 1024
    vmem_usable = max(vmem_cap - headroom, 32 * 1024 * 1024)

    weight_bytes = sum(int(w.nbytes) for w in weight_list) + int(bias.nbytes)
    out_itemsize = jnp.dtype(out_dtype).itemsize
    io_bytes = 2 * (TM * in_p * 2 + TM * out_p * out_itemsize)    # double-buffered x/out
    scratch_bytes = TM * out_p * 4                                 # identity scratch
    act_bytes = 8 * TM * max(in_p, out_p + hid_p, 2 * hid_p) * 4   # f32 intermediates

    grid = (Bp // TM,)
    out_spec = pl.BlockSpec((TM, out_p), lambda i: (i, 0))          # lane-dense stores
    kernel = functools.partial(_block_kernel, hid_p=hid_p, out_p=out_p, se_p=se_p)

    def _call(single_buffer_weights):
        def const_spec(shape):
            if single_buffer_weights:
                # Weights never change block index -> one resident buffer only.
                return pl.BlockSpec(shape, lambda i: (0, 0),
                                    pipeline_mode=pl.Buffered(1))
            return pl.BlockSpec(shape, lambda i: (0, 0))

        in_specs = [pl.BlockSpec((TM, in_p), lambda i: (i, 0))]
        in_specs += [const_spec(w.shape) for w in weight_list]
        in_specs.append(const_spec(bias.shape))

        wbuf = 1 if single_buffer_weights else 2
        est = wbuf * weight_bytes + io_bytes + scratch_bytes + act_bytes
        vmem_limit = int(min(max(est, 32 * 1024 * 1024), vmem_usable))

        return pl.pallas_call(
            kernel,
            grid=grid,
            in_specs=in_specs,
            out_specs=out_spec,
            out_shape=jax.ShapeDtypeStruct((Bp, out_p), out_dtype),
            scratch_shapes=[pltpu.VMEM((TM, out_p), jnp.float32)],
            compiler_params=pltpu.CompilerParams(
                dimension_semantics=("parallel",),   # megacore split on v7x
                vmem_limit_bytes=vmem_limit,
            ),
        )(xp, *weight_list, bias)

    try:
        out = _call(True)
        out = jax.block_until_ready(out)
    except Exception:
        # Fallback if this jax build rejects pipeline_mode=pl.Buffered(1).
        out = _call(False)

    return out[:B, :dims["out_features"]]


# ----------------------------------------------------------------------------
# Parameter construction (deterministic, synthetic). BatchNorm1d in inference
# mode folded into the preceding Linear:
#   y = ((xW + b) - mu)/sqrt(var+eps)*gamma + beta = x(W*s) + ((b-mu)*s + beta)
# ----------------------------------------------------------------------------
def _linear_init(key, fan_in, fan_out):
    kw, kb = jax.random.split(key)
    bound = 1.0 / jnp.sqrt(fan_in)
    W = jax.random.uniform(kw, (fan_in, fan_out), jnp.float32, -bound, bound)
    b = jax.random.uniform(kb, (fan_out,), jnp.float32, -bound, bound)
    return W, b


def _bn_init(key, feat):
    kg, kb = jax.random.split(key)
    gamma = 1.0 + 0.1 * jax.random.normal(kg, (feat,), jnp.float32)
    beta = 0.1 * jax.random.normal(kb, (feat,), jnp.float32)
    mean = jnp.zeros((feat,), jnp.float32)
    var = jnp.ones((feat,), jnp.float32)
    return gamma, beta, mean, var


def _fold_linear_bn(W, b, gamma, beta, mean, var, eps=1e-5):
    s = gamma / jnp.sqrt(var + eps)
    return W * s[None, :], ((b - mean) * s + beta).reshape(1, -1)


def make_params(key, in_features, out_features):
    hidden = out_features // 4
    se_hidden = max(out_features // 16, 1)
    keys = jax.random.split(key, 16)

    w1, b1 = _linear_init(keys[0], in_features, hidden)
    w1, b1 = _fold_linear_bn(w1, b1, *_bn_init(keys[1], hidden))
    wb1, bb1 = _linear_init(keys[2], hidden, hidden)
    wb1, bb1 = _fold_linear_bn(wb1, bb1, *_bn_init(keys[3], hidden))
    wb2, bb2 = _linear_init(keys[4], hidden, hidden)
    wb2, bb2 = _fold_linear_bn(wb2, bb2, *_bn_init(keys[5], hidden))
    wc, bc = _linear_init(keys[6], 2 * hidden, out_features)
    wc, bc = _fold_linear_bn(wc, bc, *_bn_init(keys[7], out_features))
    wse1, bse1 = _linear_init(keys[8], out_features, se_hidden)
    wse2, bse2 = _linear_init(keys[9], se_hidden, out_features)

    if in_features != out_features:
        wsc, bsc = _linear_init(keys[10], in_features, out_features)
        wsc, bsc = _fold_linear_bn(wsc, bsc, *_bn_init(keys[11], out_features))
    else:
        # Identity shortcut branch of the PyTorch module.
        wsc = jnp.eye(in_features, dtype=jnp.float32)
        bsc = jnp.zeros((1, out_features), jnp.float32)

    return dict(
        w_sc=wsc, b_sc=bsc,
        w1=w1, b1=b1,
        wb1=wb1, bb1=bb1,
        wb2=wb2, bb2=bb2,
        wc=wc, bc=bc,
        wse1=wse1, bse1=bse1.reshape(1, -1),
        wse2=wse2, bse2=bse2.reshape(1, -1),
    )


def reference_forward(x, p):
    """Plain-JAX reference mirroring the kernel's bf16 MXU inputs / f32 accum."""
    bf = jnp.bfloat16

    def mm(a, w):
        return jnp.dot(a.astype(bf), w.astype(bf), preferred_element_type=jnp.float32)

    identity = mm(x, p["w_sc"]) + p["b_sc"]
    h = jax.nn.relu(mm(x, p["w1"]) + p["b1"])
    br1 = jax.nn.relu(mm(h, p["wb1"]) + p["bb1"])
    br2 = jax.nn.relu(mm(h, p["wb2"]) + p["bb2"])
    comb = mm(jnp.concatenate([br1, br2], axis=1), p["wc"]) + p["bc"]
    se_h = jax.nn.relu(mm(comb, p["wse1"]) + p["bse1"])
    se = jax.nn.sigmoid(mm(se_h, p["wse2"]) + p["bse2"])
    return jax.nn.relu(comb * se + identity)


if __name__ == "__main__":
    key = jax.random.PRNGKey(0)
    kx, kp = jax.random.split(key)

    B, in_features, out_features = 8, 32, 64   # hidden=16, se_hidden=4 (padded to 128 lanes)
    x = jax.random.normal(kx, (B, in_features), jnp.float32)
    params = make_params(kp, in_features, out_features)
    weights, bias, dims = prepare_operands(params, in_features, out_features)

    out = enhanced_residual_block(x, weights, bias, dims)
    out = jax.block_until_ready(out)

    ref = reference_forward(x, params)
    assert out.shape == (B, out_features)
    # Tolerance covers bf16 matmul inputs + the approximate EUP reciprocal in
    # the sigmoid; structural errors would be O(1).
    assert jnp.allclose(out, ref, atol=1e-2, rtol=1e-2), "mismatch vs JAX reference"

    print("KERNEL_OK")
</pallas_src>

<mosaic_0001>
module attributes {stable_mosaic.version = 11 : i64} {
  func.func @_block_kernel(%arg0: i32, %arg1: memref<16x128xbf16, #tpu.memory_space<vmem>>, %arg2: memref<128x256xbf16, #tpu.memory_space<vmem>>, %arg3: memref<128x256xbf16, #tpu.memory_space<vmem>>, %arg4: memref<256x128xbf16, #tpu.memory_space<vmem>>, %arg5: memref<128x128xbf16, #tpu.memory_space<vmem>>, %arg6: memref<128x128xbf16, #tpu.memory_space<vmem>>, %arg7: memref<8x256xf32, #tpu.memory_space<vmem>>, %arg8: memref<16x128xf32, #tpu.memory_space<vmem>>, %arg9: memref<16x128xf32, #tpu.memory_space<vmem>>) attributes {dimension_semantics = [#tpu.dimension_semantics<parallel>], iteration_bounds = array<i64: 1>, scalar_prefetch = 0 : i64, scratch_operands = 1 : i64, tpu.core_type = #tpu.core_type<tc>, window_params = [{transform_indices = @transform_0, window_bounds = array<i64: 16, 128>}, {pipeline_mode = #tpu.pipeline_mode<synchronous>, transform_indices = @transform_1, window_bounds = array<i64: 128, 256>}, {pipeline_mode = #tpu.pipeline_mode<synchronous>, transform_indices = @transform_2, window_bounds = array<i64: 128, 256>}, {pipeline_mode = #tpu.pipeline_mode<synchronous>, transform_indices = @transform_3, window_bounds = array<i64: 256, 128>}, {pipeline_mode = #tpu.pipeline_mode<synchronous>, transform_indices = @transform_4, window_bounds = array<i64: 128, 128>}, {pipeline_mode = #tpu.pipeline_mode<synchronous>, transform_indices = @transform_5, window_bounds = array<i64: 128, 128>}, {pipeline_mode = #tpu.pipeline_mode<synchronous>, transform_indices = @transform_6, window_bounds = array<i64: 8, 256>}, {transform_indices = @transform_7, window_bounds = array<i64: 16, 128>}]} {
    %c0 = arith.constant 0 : index
    %c0_0 = arith.constant 0 : index
    %0 = vector.load %arg1[%c0, %c0_0] : memref<16x128xbf16, #tpu.memory_space<vmem>>, vector<16x128xbf16>
    %c0_1 = arith.constant 0 : index
    %c0_2 = arith.constant 0 : index
    %1 = vector.load %arg7[%c0_1, %c0_2] : memref<8x256xf32, #tpu.memory_space<vmem>>, vector<1x128xf32>
    %c1 = arith.constant 1 : index
    %c0_3 = arith.constant 0 : index
    %2 = vector.load %arg7[%c1, %c0_3] : memref<8x256xf32, #tpu.memory_space<vmem>>, vector<1x128xf32>
    %c2 = arith.constant 2 : index
    %c0_4 = arith.constant 0 : index
    %3 = vector.load %arg7[%c2, %c0_4] : memref<8x256xf32, #tpu.memory_space<vmem>>, vector<1x256xf32>
    %c3 = arith.constant 3 : index
    %c0_5 = arith.constant 0 : index
    %4 = vector.load %arg7[%c3, %c0_5] : memref<8x256xf32, #tpu.memory_space<vmem>>, vector<1x128xf32>
    %c4 = arith.constant 4 : index
    %c0_6 = arith.constant 0 : index
    %5 = vector.load %arg7[%c4, %c0_6] : memref<8x256xf32, #tpu.memory_space<vmem>>, vector<1x128xf32>
    %c5 = arith.constant 5 : index
    %c0_7 = arith.constant 0 : index
    %6 = vector.load %arg7[%c5, %c0_7] : memref<8x256xf32, #tpu.memory_space<vmem>>, vector<1x128xf32>
    %c0_8 = arith.constant 0 : index
    %c0_9 = arith.constant 0 : index
    %7 = vector.load %arg2[%c0_8, %c0_9] : memref<128x256xbf16, #tpu.memory_space<vmem>>, vector<128x256xbf16>
    %cst = arith.constant dense<0.000000e+00> : vector<16x256xf32>
    %8 = tpu.matmul %0, %7, %cst {dimension_numbers = #tpu.dot_dimension_numbers<[1], [0], [0], [1], [0, 0, 1, 1], [], []>} : vector<16x128xbf16>, vector<128x256xbf16>, vector<16x256xf32> -> vector<16x256xf32>
    %9 = vector.extract_strided_slice %8 {offsets = [0, 0], sizes = [16, 128], strides = [1, 1]} : vector<16x256xf32> to vector<16x128xf32>
    %10 = vector.broadcast %1 : vector<1x128xf32> to vector<16x128xf32>
    %11 = arith.addf %9, %10 : vector<16x128xf32>
    %c0_10 = arith.constant 0 : index
    %c0_11 = arith.constant 0 : index
    %12 = vector.load %arg9[%c0_10, %c0_11] : memref<16x128xf32, #tpu.memory_space<vmem>>, vector<16x128xf32>
    tpu.vector_store %arg9[%c0_10, %c0_11], %11 {strides = array<i32>} : memref<16x128xf32, #tpu.memory_space<vmem>>, vector<16x128xf32>,
    %13 = vector.extract_strided_slice %8 {offsets = [0, 128], sizes = [16, 128], strides = [1, 1]} : vector<16x256xf32> to vector<16x128xf32>
    %14 = vector.broadcast %2 : vector<1x128xf32> to vector<16x128xf32>
    %15 = arith.addf %13, %14 : vector<16x128xf32>
    %cst_12 = arith.constant 0.000000e+00 : f32
    %16 = vector.broadcast %cst_12 : f32 to vector<16x128xf32>
    %17 = arith.maximumf %15, %16 : vector<16x128xf32>
    %18 = arith.truncf %17 : vector<16x128xf32> to vector<16x128xbf16>
    %c0_13 = arith.constant 0 : index
    %c0_14 = arith.constant 0 : index
    %19 = vector.load %arg3[%c0_13, %c0_14] : memref<128x256xbf16, #tpu.memory_space<vmem>>, vector<128x256xbf16>
    %cst_15 = arith.constant dense<0.000000e+00> : vector<16x256xf32>
    %20 = tpu.matmul %18, %19, %cst_15 {dimension_numbers = #tpu.dot_dimension_numbers<[1], [0], [0], [1], [0, 0, 1, 1], [], []>} : vector<16x128xbf16>, vector<128x256xbf16>, vector<16x256xf32> -> vector<16x256xf32>
    %21 = vector.broadcast %3 : vector<1x256xf32> to vector<16x256xf32>
    %22 = arith.addf %20, %21 : vector<16x256xf32>
    %cst_16 = arith.constant 0.000000e+00 : f32
    %23 = vector.broadcast %cst_16 : f32 to vector<16x256xf32>
    %24 = arith.maximumf %22, %23 : vector<16x256xf32>
    %25 = arith.truncf %24 : vector<16x256xf32> to vector<16x256xbf16>
    %c0_17 = arith.constant 0 : index
    %c0_18 = arith.constant 0 : index
    %26 = vector.load %arg4[%c0_17, %c0_18] : memref<256x128xbf16, #tpu.memory_space<vmem>>, vector<256x128xbf16>
    %cst_19 = arith.constant dense<0.000000e+00> : vector<16x128xf32>
    %27 = tpu.matmul %25, %26, %cst_19 {dimension_numbers = #tpu.dot_dimension_numbers<[1], [0], [0], [1], [0, 0, 1, 1], [], []>} : vector<16x256xbf16>, vector<256x128xbf16>, vector<16x128xf32> -> vector<16x128xf32>
    %28 = vector.broadcast %4 : vector<1x128xf32> to vector<16x128xf32>
    %29 = arith.addf %27, %28 : vector<16x128xf32>
    %30 = arith.truncf %29 : vector<16x128xf32> to vector<16x128xbf16>
    %c0_20 = arith.constant 0 : index
    %c0_21 = arith.constant 0 : index
    %31 = vector.load %arg5[%c0_20, %c0_21] : memref<128x128xbf16, #tpu.memory_space<vmem>>, vector<128x128xbf16>
    %cst_22 = arith.constant dense<0.000000e+00> : vector<16x128xf32>
    %32 = tpu.matmul %30, %31, %cst_22 {dimension_numbers = #tpu.dot_dimension_numbers<[1], [0], [0], [1], [0, 0, 1, 1], [], []>} : vector<16x128xbf16>, vector<128x128xbf16>, vector<16x128xf32> -> vector<16x128xf32>
    %33 = vector.broadcast %5 : vector<1x128xf32> to vector<16x128xf32>
    %34 = arith.addf %32, %33 : vector<16x128xf32>
    %cst_23 = arith.constant 0.000000e+00 : f32
    %35 = vector.broadcast %cst_23 : f32 to vector<16x128xf32>
    %36 = arith.maximumf %34, %35 : vector<16x128xf32>
    %37 = arith.truncf %36 : vector<16x128xf32> to vector<16x128xbf16>
    %c0_24 = arith.constant 0 : index
    %c0_25 = arith.constant 0 : index
    %38 = vector.load %arg6[%c0_24, %c0_25] : memref<128x128xbf16, #tpu.memory_space<vmem>>, vector<128x128xbf16>
    %cst_26 = arith.constant dense<0.000000e+00> : vector<16x128xf32>
    %39 = tpu.matmul %37, %38, %cst_26 {dimension_numbers = #tpu.dot_dimension_numbers<[1], [0], [0], [1], [0, 0, 1, 1], [], []>} : vector<16x128xbf16>, vector<128x128xbf16>, vector<16x128xf32> -> vector<16x128xf32>
    %40 = vector.broadcast %6 : vector<1x128xf32> to vector<16x128xf32>
    %41 = arith.addf %39, %40 : vector<16x128xf32>
    %cst_27 = arith.constant 0.000000e+00 : f32
    %42 = vector.broadcast %cst_27 : f32 to vector<16x128xf32>
    %43 = arith.subf %42, %41 : vector<16x128xf32>
    %44 = math.exp %43 : vector<16x128xf32>
    %cst_28 = arith.constant 1.000000e+00 : f32
    %45 = vector.broadcast %cst_28 : f32 to vector<16x128xf32>
    %46 = arith.addf %45, %44 : vector<16x128xf32>
    %47 = tpu.reciprocal %46 {approx = true} : vector<16x128xf32> -> vector<16x128xf32>
    %48 = arith.mulf %29, %47 : vector<16x128xf32>
    %c0_29 = arith.constant 0 : index
    %c0_30 = arith.constant 0 : index
    %49 = vector.load %arg9[%c0_29, %c0_30] : memref<16x128xf32, #tpu.memory_space<vmem>>, vector<16x128xf32>
    %50 = arith.addf %48, %49 : vector<16x128xf32>
    %cst_31 = arith.constant 0.000000e+00 : f32
    %51 = vector.broadcast %cst_31 : f32 to vector<16x128xf32>
    %52 = arith.maximumf %50, %51 : vector<16x128xf32>
    %c0_32 = arith.constant 0 : index
    %c0_33 = arith.constant 0 : index
    %53 = vector.load %arg8[%c0_32, %c0_33] : memref<16x128xf32, #tpu.memory_space<vmem>>, vector<16x128xf32>
    tpu.vector_store %arg8[%c0_32, %c0_33], %52 {strides = array<i32>} : memref<16x128xf32, #tpu.memory_space<vmem>>, vector<16x128xf32>,
    return
  }
  func.func @transform_0(%arg0: i32) -> (i32, i32) {
    %c0_i32 = arith.constant 0 : i32
    %c0_i32_0 = arith.constant 0 : i32
    return %arg0, %c0_i32 : i32, i32
  }
  func.func @transform_1(%arg0: i32) -> (i32, i32) {
    %c0_i32 = arith.constant 0 : i32
    %c0_i32_0 = arith.constant 0 : i32
    %c0_i32_1 = arith.constant 0 : i32
    return %c0_i32, %c0_i32_0 : i32, i32
  }
  func.func @transform_2(%arg0: i32) -> (i32, i32) {
    %c0_i32 = arith.constant 0 : i32
    %c0_i32_0 = arith.constant 0 : i32
    %c0_i32_1 = arith.constant 0 : i32
    return %c0_i32, %c0_i32_0 : i32, i32
  }
  func.func @transform_3(%arg0: i32) -> (i32, i32) {
    %c0_i32 = arith.constant 0 : i32
    %c0_i32_0 = arith.constant 0 : i32
    %c0_i32_1 = arith.constant 0 : i32
    return %c0_i32, %c0_i32_0 : i32, i32
  }
  func.func @transform_4(%arg0: i32) -> (i32, i32) {
    %c0_i32 = arith.constant 0 : i32
    %c0_i32_0 = arith.constant 0 : i32
    %c0_i32_1 = arith.constant 0 : i32
    return %c0_i32, %c0_i32_0 : i32, i32
  }
  func.func @transform_5(%arg0: i32) -> (i32, i32) {
    %c0_i32 = arith.constant 0 : i32
    %c0_i32_0 = arith.constant 0 : i32
    %c0_i32_1 = arith.constant 0 : i32
    return %c0_i32, %c0_i32_0 : i32, i32
  }
  func.func @transform_6(%arg0: i32) -> (i32, i32) {
    %c0_i32 = arith.constant 0 : i32
    %c0_i32_0 = arith.constant 0 : i32
    %c0_i32_1 = arith.constant 0 : i32
    return %c0_i32, %c0_i32_0 : i32, i32
  }
  func.func @transform_7(%arg0: i32) -> (i32, i32) {
    %c0_i32 = arith.constant 0 : i32
    %c0_i32_0 = arith.constant 0 : i32
    return %arg0, %c0_i32 : i32, i32
  }
}

module attributes {stable_mosaic.version = 11 : i64} {
  func.func @_block_kernel(%arg0: i32, %arg1: memref<16x128xbf16, #tpu.memory_space<vmem>>, %arg2: memref<128x256xbf16, #tpu.memory_space<vmem>>, %arg3: memref<128x256xbf16, #tpu.memory_space<vmem>>, %arg4: memref<256x128xbf16, #tpu.memory_space<vmem>>, %arg5: memref<128x128xbf16, #tpu.memory_space<vmem>>, %arg6: memref<128x128xbf16, #tpu.memory_space<vmem>>, %arg7: memref<8x256xf32, #tpu.memory_space<vmem>>, %arg8: memref<16x128xf32, #tpu.memory_space<vmem>>, %arg9: memref<16x128xf32, #tpu.memory_space<vmem>>) attributes {dimension_semantics = [#tpu.dimension_semantics<parallel>], iteration_bounds = array<i64: 1>, scalar_prefetch = 0 : i64, scratch_operands = 1 : i64, tpu.core_type = #tpu.core_type<tc>, window_params = [{transform_indices = @transform_0, window_bounds = array<i64: 16, 128>}, {pipeline_mode = #tpu.pipeline_mode<synchronous>, transform_indices = @transform_1, window_bounds = array<i64: 128, 256>}, {pipeline_mode = #tpu.pipeline_mode<synchronous>, transform_indices = @transform_2, window_bounds = array<i64: 128, 256>}, {pipeline_mode = #tpu.pipeline_mode<synchronous>, transform_indices = @transform_3, window_bounds = array<i64: 256, 128>}, {pipeline_mode = #tpu.pipeline_mode<synchronous>, transform_indices = @transform_4, window_bounds = array<i64: 128, 128>}, {pipeline_mode = #tpu.pipeline_mode<synchronous>, transform_indices = @transform_5, window_bounds = array<i64: 128, 128>}, {pipeline_mode = #tpu.pipeline_mode<synchronous>, transform_indices = @transform_6, window_bounds = array<i64: 8, 256>}, {transform_indices = @transform_7, window_bounds = array<i64: 16, 128>}]} {
    %c0 = arith.constant 0 : index
    %c0_0 = arith.constant 0 : index
    %0 = vector.load %arg1[%c0, %c0_0] : memref<16x128xbf16, #tpu.memory_space<vmem>>, vector<16x128xbf16>
    %c0_1 = arith.constant 0 : index
    %c0_2 = arith.constant 0 : index
    %1 = vector.load %arg7[%c0_1, %c0_2] : memref<8x256xf32, #tpu.memory_space<vmem>>, vector<1x128xf32>
    %c1 = arith.constant 1 : index
    %c0_3 = arith.constant 0 : index
    %2 = vector.load %arg7[%c1, %c0_3] : memref<8x256xf32, #tpu.memory_space<vmem>>, vector<1x128xf32>
    %c2 = arith.constant 2 : index
    %c0_4 = arith.constant 0 : index
    %3 = vector.load %arg7[%c2, %c0_4] : memref<8x256xf32, #tpu.memory_space<vmem>>, vector<1x256xf32>
    %c3 = arith.constant 3 : index
    %c0_5 = arith.constant 0 : index
    %4 = vector.load %arg7[%c3, %c0_5] : memref<8x256xf32, #tpu.memory_space<vmem>>, vector<1x128xf32>
    %c4 = arith.constant 4 : index
    %c0_6 = arith.constant 0 : index
    %5 = vector.load %arg7[%c4, %c0_6] : memref<8x256xf32, #tpu.memory_space<vmem>>, vector<1x128xf32>
    %c5 = arith.constant 5 : index
    %c0_7 = arith.constant 0 : index
    %6 = vector.load %arg7[%c5, %c0_7] : memref<8x256xf32, #tpu.memory_space<vmem>>, vector<1x128xf32>
    %c0_8 = arith.constant 0 : index
    %c0_9 = arith.constant 0 : index
    %7 = vector.load %arg2[%c0_8, %c0_9] : memref<128x256xbf16, #tpu.memory_space<vmem>>, vector<128x256xbf16>
    %cst = arith.constant dense<0.000000e+00> : vector<16x256xf32>
    %8 = tpu.matmul %0, %7, %cst {dimension_numbers = #tpu.dot_dimension_numbers<[1], [0], [0], [1], [0, 0, 1, 1], [], []>} : vector<16x128xbf16>, vector<128x256xbf16>, vector<16x256xf32> -> vector<16x256xf32>
    %9 = vector.extract_strided_slice %8 {offsets = [0, 0], sizes = [16, 128], strides = [1, 1]} : vector<16x256xf32> to vector<16x128xf32>
    %10 = vector.broadcast %1 : vector<1x128xf32> to vector<16x128xf32>
    %11 = arith.addf %9, %10 : vector<16x128xf32>
    %c0_10 = arith.constant 0 : index
    %c0_11 = arith.constant 0 : index
    %12 = vector.load %arg9[%c0_10, %c0_11] : memref<16x128xf32, #tpu.memory_space<vmem>>, vector<16x128xf32>
    tpu.vector_store %arg9[%c0_10, %c0_11], %11 {strides = array<i32>} : memref<16x128xf32, #tpu.memory_space<vmem>>, vector<16x128xf32>,
    %13 = vector.extract_strided_slice %8 {offsets = [0, 128], sizes = [16, 128], strides = [1, 1]} : vector<16x256xf32> to vector<16x128xf32>
    %14 = vector.broadcast %2 : vector<1x128xf32> to vector<16x128xf32>
    %15 = arith.addf %13, %14 : vector<16x128xf32>
    %cst_12 = arith.constant 0.000000e+00 : f32
    %16 = vector.broadcast %cst_12 : f32 to vector<16x128xf32>
    %17 = arith.maximumf %15, %16 : vector<16x128xf32>
    %18 = arith.truncf %17 : vector<16x128xf32> to vector<16x128xbf16>
    %c0_13 = arith.constant 0 : index
    %c0_14 = arith.constant 0 : index
    %19 = vector.load %arg3[%c0_13, %c0_14] : memref<128x256xbf16, #tpu.memory_space<vmem>>, vector<128x256xbf16>
    %cst_15 = arith.constant dense<0.000000e+00> : vector<16x256xf32>
    %20 = tpu.matmul %18, %19, %cst_15 {dimension_numbers = #tpu.dot_dimension_numbers<[1], [0], [0], [1], [0, 0, 1, 1], [], []>} : vector<16x128xbf16>, vector<128x256xbf16>, vector<16x256xf32> -> vector<16x256xf32>
    %21 = vector.broadcast %3 : vector<1x256xf32> to vector<16x256xf32>
    %22 = arith.addf %20, %21 : vector<16x256xf32>
    %cst_16 = arith.constant 0.000000e+00 : f32
    %23 = vector.broadcast %cst_16 : f32 to vector<16x256xf32>
    %24 = arith.maximumf %22, %23 : vector<16x256xf32>
    %25 = arith.truncf %24 : vector<16x256xf32> to vector<16x256xbf16>
    %c0_17 = arith.constant 0 : index
    %c0_18 = arith.constant 0 : index
    %26 = vector.load %arg4[%c0_17, %c0_18] : memref<256x128xbf16, #tpu.memory_space<vmem>>, vector<256x128xbf16>
    %cst_19 = arith.constant dense<0.000000e+00> : vector<16x128xf32>
    %27 = tpu.matmul %25, %26, %cst_19 {dimension_numbers = #tpu.dot_dimension_numbers<[1], [0], [0], [1], [0, 0, 1, 1], [], []>} : vector<16x256xbf16>, vector<256x128xbf16>, vector<16x128xf32> -> vector<16x128xf32>
    %28 = vector.broadcast %4 : vector<1x128xf32> to vector<16x128xf32>
    %29 = arith.addf %27, %28 : vector<16x128xf32>
    %30 = arith.truncf %29 : vector<16x128xf32> to vector<16x128xbf16>
    %c0_20 = arith.constant 0 : index
    %c0_21 = arith.constant 0 : index
    %31 = vector.load %arg5[%c0_20, %c0_21] : memref<128x128xbf16, #tpu.memory_space<vmem>>, vector<128x128xbf16>
    %cst_22 = arith.constant dense<0.000000e+00> : vector<16x128xf32>
    %32 = tpu.matmul %30, %31, %cst_22 {dimension_numbers = #tpu.dot_dimension_numbers<[1], [0], [0], [1], [0, 0, 1, 1], [], []>} : vector<16x128xbf16>, vector<128x128xbf16>, vector<16x128xf32> -> vector<16x128xf32>
    %33 = vector.broadcast %5 : vector<1x128xf32> to vector<16x128xf32>
    %34 = arith.addf %32, %33 : vector<16x128xf32>
    %cst_23 = arith.constant 0.000000e+00 : f32
    %35 = vector.broadcast %cst_23 : f32 to vector<16x128xf32>
    %36 = arith.maximumf %34, %35 : vector<16x128xf32>
    %37 = arith.truncf %36 : vector<16x128xf32> to vector<16x128xbf16>
    %c0_24 = arith.constant 0 : index
    %c0_25 = arith.constant 0 : index
    %38 = vector.load %arg6[%c0_24, %c0_25] : memref<128x128xbf16, #tpu.memory_space<vmem>>, vector<128x128xbf16>
    %cst_26 = arith.constant dense<0.000000e+00> : vector<16x128xf32>
    %39 = tpu.matmul %37, %38, %cst_26 {dimension_numbers = #tpu.dot_dimension_numbers<[1], [0], [0], [1], [0, 0, 1, 1], [], []>} : vector<16x128xbf16>, vector<128x128xbf16>, vector<16x128xf32> -> vector<16x128xf32>
    %40 = vector.broadcast %6 : vector<1x128xf32> to vector<16x128xf32>
    %41 = arith.addf %39, %40 : vector<16x128xf32>
    %cst_27 = arith.constant 0.000000e+00 : f32
    %42 = vector.broadcast %cst_27 : f32 to vector<16x128xf32>
    %43 = arith.subf %42, %41 : vector<16x128xf32>
    %44 = math.exp %43 : vector<16x128xf32>
    %cst_28 = arith.constant 1.000000e+00 : f32
    %45 = vector.broadcast %cst_28 : f32 to vector<16x128xf32>
    %46 = arith.addf %45, %44 : vector<16x128xf32>
    %47 = tpu.reciprocal %46 {approx = true} : vector<16x128xf32> -> vector<16x128xf32>
    %48 = arith.mulf %29, %47 : vector<16x128xf32>
    %c0_29 = arith.constant 0 : index
    %c0_30 = arith.constant 0 : index
    %49 = vector.load %arg9[%c0_29, %c0_30] : memref<16x128xf32, #tpu.memory_space<vmem>>, vector<16x128xf32>
    %50 = arith.addf %48, %49 : vector<16x128xf32>
    %cst_31 = arith.constant 0.000000e+00 : f32
    %51 = vector.broadcast %cst_31 : f32 to vector<16x128xf32>
    %52 = arith.maximumf %50, %51 : vector<16x128xf32>
    %c0_32 = arith.constant 0 : index
    %c0_33 = arith.constant 0 : index
    %53 = vector.load %arg8[%c0_32, %c0_33] : memref<16x128xf32, #tpu.memory_space<vmem>>, vector<16x128xf32>
    tpu.vector_store %arg8[%c0_32, %c0_33], %52 {strides = array<i32>} : memref<16x128xf32, #tpu.memory_space<vmem>>, vector<16x128xf32>,
    return
  }
  func.func @transform_0(%arg0: i32) -> (i32, i32) {
    %c0_i32 = arith.constant 0 : i32
    %c0_i32_0 = arith.constant 0 : i32
    return %arg0, %c0_i32 : i32, i32
  }
  func.func @transform_1(%arg0: i32) -> (i32, i32) {
    %c0_i32 = arith.constant 0 : i32
    %c0_i32_0 = arith.constant 0 : i32
    %c0_i32_1 = arith.constant 0 : i32
    return %c0_i32, %c0_i32_0 : i32, i32
  }
  func.func @transform_2(%arg0: i32) -> (i32, i32) {
    %c0_i32 = arith.constant 0 : i32
    %c0_i32_0 = arith.constant 0 : i32
    %c0_i32_1 = arith.constant 0 : i32
    return %c0_i32, %c0_i32_0 : i32, i32
  }
  func.func @transform_3(%arg0: i32) -> (i32, i32) {
    %c0_i32 = arith.constant 0 : i32
    %c0_i32_0 = arith.constant 0 : i32
    %c0_i32_1 = arith.constant 0 : i32
    return %c0_i32, %c0_i32_0 : i32, i32
  }
  func.func @transform_4(%arg0: i32) -> (i32, i32) {
    %c0_i32 = arith.constant 0 : i32
    %c0_i32_0 = arith.constant 0 : i32
    %c0_i32_1 = arith.constant 0 : i32
    return %c0_i32, %c0_i32_0 : i32, i32
  }
  func.func @transform_5(%arg0: i32) -> (i32, i32) {
    %c0_i32 = arith.constant 0 : i32
    %c0_i32_0 = arith.constant 0 : i32
    %c0_i32_1 = arith.constant 0 : i32
    return %c0_i32, %c0_i32_0 : i32, i32
  }
  func.func @transform_6(%arg0: i32) -> (i32, i32) {
    %c0_i32 = arith.constant 0 : i32
    %c0_i32_0 = arith.constant 0 : i32
    %c0_i32_1 = arith.constant 0 : i32
    return %c0_i32, %c0_i32_0 : i32, i32
  }
  func.func @transform_7(%arg0: i32) -> (i32, i32) {
    %c0_i32 = arith.constant 0 : i32
    %c0_i32_0 = arith.constant 0 : i32
    return %arg0, %c0_i32 : i32, i32
  }
}

</mosaic_0001>

<llo_original>
// kernel: tpu_custom_call.1
$region0: #{tpu_custom_call.1}
  #allocation0 [shape = 'u32[]', space=smem, size = 0x4, offset = 0x4, fixed_abs, tag = 'smem constant byte address 0x4 - core index']
  #allocation1 [shape = 'u32[144,128]{1,0:T(1,128)}', space=vmem, size = 0x12000, scoped, tag = 'internal scratch']
  #allocation2 [shape = 'f32[16,128]{1,0:T(8,128)}', space=vmem, size = 0x2000, scoped, tag = 'scratch operand']
  %s0 = inlined_call_operand.hbm [shape: bf16[16,128], index: 0, kind: input, shape index: {}]
  %s1 = inlined_call_operand.hbm [shape: bf16[128,256], index: 1, kind: input, shape index: {}]
  %s2 = inlined_call_operand.hbm [shape: bf16[128,256], index: 2, kind: input, shape index: {}]
  %s3 = inlined_call_operand.hbm [shape: bf16[256,128], index: 3, kind: input, shape index: {}]
  %s4 = inlined_call_operand.hbm [shape: bf16[128,128], index: 4, kind: input, shape index: {}]
  %s5 = inlined_call_operand.hbm [shape: bf16[128,128], index: 5, kind: input, shape index: {}]
  %s6 = inlined_call_operand.vmem [shape: f32[8,256], index: 6, kind: input, shape index: {}]
  %s7 = inlined_call_operand.hbm [shape: f32[16,128], index: 7, kind: output, shape index: {}]
  %s8 = sld [smem:[#allocation0]]
  $region62: #{tpu_custom_call.1} parent=0
    _
  %s10 = ssub.s32 1, %s8
  %s11 = scalar_select 0, %s10, %s8
  $region1: #{tpu_custom_call.1} parent=0
    #allocation3 [shape = 'u8[4096]{0}', space=vmem, size = 0x1000, scoped, tag = 'input window, operand 0, single buffered']
    #allocation4 [shape = 's32[1]{0}', space=sflag, size = 0x4, scoped, tag = 'scoped memory for tpu_custom_call.1']
    #allocation5 [shape = 's32[1]{0}', space=sflag, size = 0x4, scoped, tag = 'scoped memory for tpu_custom_call.1']
    #allocation6 [shape = 'u8[65536]{0}', space=vmem, size = 0x10000, scoped, tag = 'input window, operand 1, single buffered']
    #allocation7 [shape = 's32[1]{0}', space=sflag, size = 0x4, scoped, tag = 'scoped memory for tpu_custom_call.1']
    #allocation8 [shape = 'u8[65536]{0}', space=vmem, size = 0x10000, scoped, tag = 'input window, operand 2, single buffered']
    #allocation9 [shape = 'u8[65536]{0}', space=vmem, size = 0x10000, scoped, tag = 'input window, operand 3, single buffered']
    #allocation10 [shape = 's32[1]{0}', space=sflag, size = 0x4, scoped, tag = 'scoped memory for tpu_custom_call.1']
    #allocation11 [shape = 'u8[32768]{0}', space=vmem, size = 0x8000, scoped, tag = 'input window, operand 4, single buffered']
    #allocation12 [shape = 'u8[32768]{0}', space=vmem, size = 0x8000, scoped, tag = 'input window, operand 5, single buffered']
    #allocation13 [shape = 's32[1]{0}', space=sflag, size = 0x4, scoped, tag = 'scoped memory for tpu_custom_call.1']
    #allocation14 [shape = 'u8[8192]{0}', space=vmem, size = 0x2000, scoped, tag = 'output window, operand 0, single buffered']
    %12 = vsyncpa [#allocation4], 0
    %13 = vsyncpa [#allocation7], 0
    %14 = vsyncpa [#allocation10], 0
    %15 = vsyncpa [#allocation13], 0
    %16 = vsyncpa [#allocation5], 0
    // Predicated region
    $region2: #{tpu_custom_call.1} parent=1 // pred_check
      _
    $region3: #{tpu_custom_call.1} parent=1 // pred_check_branch
      %18 = sbr.rel (0) target = $region5
    $region4: #{tpu_custom_call.1} parent=1 // pred_region
      %s20 = ssub.s32 128, 128
      %21 = vsyncadd [#allocation4], %s20
      %s22 = sshll.u32 [#allocation3], 4
      %s23 = int_to_ptr.vmem [resolvable:$true] %s22
      %28 = dma.hbm_to_vmem [thread:$0]  %s0, 128, %s23, [#allocation4], 64, 64, 4
    $region5: #{tpu_custom_call.1} parent=1 // pred_fallthru
      _
    // Predicated region
    $region6: #{tpu_custom_call.1} parent=1 // pred_check
      _
    $region7: #{tpu_custom_call.1} parent=1 // pred_check_branch
      %30 = sbr.rel (0) target = $region9
    $region8: #{tpu_custom_call.1} parent=1 // pred_region
      %s32 = ssub.s32 2048, 2048
      %33 = vsyncadd [#allocation7], %s32
      %s34 = sshll.u32 [#allocation6], 4
      %s35 = int_to_ptr.vmem [resolvable:$true] %s34
      %40 = dma.hbm_to_vmem [thread:$0]  %s1, 2048, %s35, [#allocation7], 128, 128, 8
    $region9: #{tpu_custom_call.1} parent=1 // pred_fallthru
      _
    // Predicated region
    $region10: #{tpu_custom_call.1} parent=1 // pred_check
      _
    $region11: #{tpu_custom_call.1} parent=1 // pred_check_branch
      %42 = sbr.rel (0) target = $region13
    $region12: #{tpu_custom_call.1} parent=1 // pred_region
      %s44 = ssub.s32 2048, 2048
      %45 = vsyncadd [#allocation7], %s44
      %s46 = sshll.u32 [#allocation8], 4
      %s47 = int_to_ptr.vmem [resolvable:$true] %s46
      %52 = dma.hbm_to_vmem [thread:$0]  %s2, 2048, %s47, [#allocation7], 128, 128, 8
    $region13: #{tpu_custom_call.1} parent=1 // pred_fallthru
      _
    // Predicated region
    $region14: #{tpu_custom_call.1} parent=1 // pred_check
      _
    $region15: #{tpu_custom_call.1} parent=1 // pred_check_branch
      %54 = sbr.rel (0) target = $region17
    $region16: #{tpu_custom_call.1} parent=1 // pred_region
      %s56 = ssub.s32 2048, 2048
      %57 = vsyncadd [#allocation10], %s56
      %s58 = sshll.u32 [#allocation9], 4
      %s59 = int_to_ptr.vmem [resolvable:$true] %s58
      %64 = dma.hbm_to_vmem [thread:$0]  %s3, 2048, %s59, [#allocation10], 64, 64, 4
    $region17: #{tpu_custom_call.1} parent=1 // pred_fallthru
      _
    // Predicated region
    $region18: #{tpu_custom_call.1} parent=1 // pred_check
      _
    $region19: #{tpu_custom_call.1} parent=1 // pred_check_branch
      %66 = sbr.rel (0) target = $region21
    $region20: #{tpu_custom_call.1} parent=1 // pred_region
      %s68 = ssub.s32 1024, 1024
      %69 = vsyncadd [#allocation10], %s68
      %s70 = sshll.u32 [#allocation11], 4
      %s71 = int_to_ptr.vmem [resolvable:$true] %s70
      %76 = dma.hbm_to_vmem [thread:$0]  %s4, 1024, %s71, [#allocation10], 64, 64, 4
    $region21: #{tpu_custom_call.1} parent=1 // pred_fallthru
      _
    // Predicated region
    $region22: #{tpu_custom_call.1} parent=1 // pred_check
      _
    $region23: #{tpu_custom_call.1} parent=1 // pred_check_branch
      %78 = sbr.rel (0) target = $region25
    $region24: #{tpu_custom_call.1} parent=1 // pred_region
      %s80 = ssub.s32 1024, 1024
      %81 = vsyncadd [#allocation13], %s80
      %s82 = sshll.u32 [#allocation12], 4
      %s83 = int_to_ptr.vmem [resolvable:$true] %s82
      %88 = dma.hbm_to_vmem [thread:$0]  %s5, 1024, %s83, [#allocation13], 64, 64, 4
    $region25: #{tpu_custom_call.1} parent=1 // pred_fallthru
      _
    // Predicated region
    $region26: #{tpu_custom_call.1} parent=1 // pred_check
      _
    $region27: #{tpu_custom_call.1} parent=1 // pred_check_branch
      %90 = sbr.rel (0) target = $region29
    $region28: #{tpu_custom_call.1} parent=1 // pred_region
      _
    $region29: #{tpu_custom_call.1} parent=1 // pred_fallthru
      _
    // Predicated region
    $region30: #{tpu_custom_call.1} parent=1 // pred_check
      _
    $region31: #{tpu_custom_call.1} parent=1 // pred_check_branch
      %92 = sbr.rel (0) target = $region33
    $region32: #{tpu_custom_call.1} parent=1 // pred_region
      %93 = dma.done [#allocation4], 128
    $region33: #{tpu_custom_call.1} parent=1 // pred_fallthru
      _
    // Predicated region
    $region34: #{tpu_custom_call.1} parent=1 // pred_check
      _
    $region35: #{tpu_custom_call.1} parent=1 // pred_check_branch
      %95 = sbr.rel (0) target = $region37
    $region36: #{tpu_custom_call.1} parent=1 // pred_region
      %96 = dma.done [#allocation7], 2048
    $region37: #{tpu_custom_call.1} parent=1 // pred_fallthru
      _
    // Predicated region
    $region38: #{tpu_custom_call.1} parent=1 // pred_check
      _
    $region39: #{tpu_custom_call.1} parent=1 // pred_check_branch
      %98 = sbr.rel (0) target = $region41
    $region40: #{tpu_custom_call.1} parent=1 // pred_region
      %99 = dma.done [#allocation7], 2048
    $region41: #{tpu_custom_call.1} parent=1 // pred_fallthru
      _
    // Predicated region
    $region42: #{tpu_custom_call.1} parent=1 // pred_check
      _
    $region43: #{tpu_custom_call.1} parent=1 // pred_check_branch
      %101 = sbr.rel (0) target = $region45
    $region44: #{tpu_custom_call.1} parent=1 // pred_region
      %102 = dma.done [#allocation10], 2048
    $region45: #{tpu_custom_call.1} parent=1 // pred_fallthru
      _
    // Predicated region
    $region46: #{tpu_custom_call.1} parent=1 // pred_check
      _
    $region47: #{tpu_custom_call.1} parent=1 // pred_check_branch
      %104 = sbr.rel (0) target = $region49
    $region48: #{tpu_custom_call.1} parent=1 // pred_region
      %105 = dma.done [#allocation10], 1024
    $region49: #{tpu_custom_call.1} parent=1 // pred_fallthru
      _
    // Predicated region
    $region50: #{tpu_custom_call.1} parent=1 // pred_check
      _
    $region51: #{tpu_custom_call.1} parent=1 // pred_check_branch
      %107 = sbr.rel (0) target = $region53
    $region52: #{tpu_custom_call.1} parent=1 // pred_region
      %108 = dma.done [#allocation13], 1024
    $region53: #{tpu_custom_call.1} parent=1 // pred_fallthru
      _
    %v110 = vld [vmem:[#allocation3] sm:$0xf]
    %v111 = vld [vmem:[#allocation3 + $0x4] sm:$0xf]
    %v112 = vld [vmem:[%s6] ss:$0 sm:$0xff]
    %v113 = vld [vmem:[%s6 + $0x1] ss:$0 sm:$0xff]
    %s114 = scalar_lea.vmem %s6, 2
    %v115 = vld [vmem:[%s114] ss:$8 sm:$0x3]
    %v116 = vld [vmem:[%s6 + $0x3] ss:$0 sm:$0xff]
    %v117 = vld [vmem:[%s6 + $0x4] ss:$0 sm:$0xff]
    %v118 = vld [vmem:[%s6 + $0x5] ss:$0 sm:$0xff]
    %v119 = vld [vmem:[#allocation6] sm:$0xff]
    %v120 = vld [vmem:[#allocation6 + $0x8] sm:$0xff]
    %v121 = vld [vmem:[#allocation6 + $0x10] sm:$0xff]
    %v122 = vld [vmem:[#allocation6 + $0x18] sm:$0xff]
    %v123 = vld [vmem:[#allocation6 + $0x20] sm:$0xff]
    %v124 = vld [vmem:[#allocation6 + $0x28] sm:$0xff]
    %v125 = vld [vmem:[#allocation6 + $0x30] sm:$0xff]
    %v126 = vld [vmem:[#allocation6 + $0x38] sm:$0xff]
    %v127 = vld [vmem:[#allocation6 + $0x40] sm:$0xff]
    %v128 = vld [vmem:[#allocation6 + $0x48] sm:$0xff]
    %v129 = vld [vmem:[#allocation6 + $0x50] sm:$0xff]
    %v130 = vld [vmem:[#allocation6 + $0x58] sm:$0xff]
    %v131 = vld [vmem:[#allocation6 + $0x60] sm:$0xff]
    %v132 = vld [vmem:[#allocation6 + $0x68] sm:$0xff]
    %v133 = vld [vmem:[#allocation6 + $0x70] sm:$0xff]
    %v134 = vld [vmem:[#allocation6 + $0x78] sm:$0xff]
    %v137 = vunpack.c.l.b16 %v110
    %v138 = vunpack.c.l.b16 %v111
    %v139 = vpack.c.b16 %v138, %v137
    %v157 = vunpack.c.l.b16 %v119
    %v158 = vunpack.c.h.b16 %v119
    %v159 = vunpack.c.l.b16 %v120
    %v160 = vunpack.c.h.b16 %v120
    %v161 = vunpack.c.l.b16 %v121
    %v162 = vunpack.c.h.b16 %v121
    %v163 = vunpack.c.l.b16 %v122
    %v164 = vunpack.c.h.b16 %v122
    %v165 = vunpack.c.l.b16 %v123
    %v166 = vunpack.c.h.b16 %v123
    %v167 = vunpack.c.l.b16 %v124
    %v168 = vunpack.c.h.b16 %v124
    %v169 = vunpack.c.l.b16 %v125
    %v170 = vunpack.c.h.b16 %v125
    %v171 = vunpack.c.l.b16 %v126
    %v172 = vunpack.c.h.b16 %v126
    %v173 = vunpack.c.l.b16 %v127
    %v174 = vunpack.c.h.b16 %v127
    %v175 = vunpack.c.l.b16 %v128
    %v176 = vunpack.c.h.b16 %v128
    %v177 = vunpack.c.l.b16 %v129
    %v178 = vunpack.c.h.b16 %v129
    %v179 = vunpack.c.l.b16 %v130
    %v180 = vunpack.c.h.b16 %v130
    %v181 = vunpack.c.l.b16 %v131
    %v182 = vunpack.c.h.b16 %v131
    %v183 = vunpack.c.l.b16 %v132
    %v184 = vunpack.c.h.b16 %v132
    %v185 = vunpack.c.l.b16 %v133
    %v186 = vunpack.c.h.b16 %v133
    %v187 = vunpack.c.l.b16 %v134
    %v188 = vunpack.c.h.b16 %v134
    %v189 = vpack.c.b16 %v159, %v157
    %v190 = vpack.c.b16 %v160, %v158
    %v191 = vpack.c.b16 %v163, %v161
    %v192 = vpack.c.b16 %v164, %v162
    %v193 = vpack.c.b16 %v167, %v165
    %v194 = vpack.c.b16 %v168, %v166
    %v195 = vpack.c.b16 %v171, %v169
    %v196 = vpack.c.b16 %v172, %v170
    %v197 = vpack.c.b16 %v175, %v173
    %v198 = vpack.c.b16 %v176, %v174
    %v199 = vpack.c.b16 %v179, %v177
    %v200 = vpack.c.b16 %v180, %v178
    %v201 = vpack.c.b16 %v183, %v181
    %v202 = vpack.c.b16 %v184, %v182
    %v203 = vpack.c.b16 %v187, %v185
    %v204 = vpack.c.b16 %v188, %v186
    %221 = vmatprep.subr.bf16.mxu0 %v190
    %222 = vmatpush1.bf16.msra.mxu0 %v189
    %223 = vmatprep.subr.bf16.mxu0 %v192
    %224 = vmatpush1.bf16.msra.mxu0 %v191
    %225 = vmatprep.subr.bf16.mxu0 %v194
    %226 = vmatpush1.bf16.msra.mxu0 %v193
    %227 = vmatprep.subr.bf16.mxu0 %v196
    %228 = vmatpush1.bf16.msra.mxu0 %v195
    %229 = vmatprep.subr.bf16.mxu0 %v198
    %230 = vmatpush1.bf16.msra.mxu0 %v197
    %231 = vmatprep.subr.bf16.mxu0 %v200
    %232 = vmatpush1.bf16.msra.mxu0 %v199
    %233 = vmatprep.subr.bf16.mxu0 %v202
    %234 = vmatpush1.bf16.msra.mxu0 %v201
    %235 = vmatprep.subr.bf16.mxu0 %v204
    %236 = vmatpush1.bf16.msra.mxu0 %v203
    %237 = vmatprep.subr.bf16.mxu0 0
    %238 = vmatpush1.bf16.msra.mxu0 0
    %239 = vmatprep.subr.bf16.mxu0 0
    %240 = vmatpush1.bf16.msra.mxu0 0
    %241 = vmatprep.subr.bf16.mxu0 0
    %242 = vmatpush1.bf16.msra.mxu0 0
    %243 = vmatprep.subr.bf16.mxu0 0
    %244 = vmatpush1.bf16.msra.mxu0 0
    %245 = vmatprep.subr.bf16.mxu0 0
    %246 = vmatpush1.bf16.msra.mxu0 0
    %247 = vmatprep.subr.bf16.mxu0 0
    %248 = vmatpush1.bf16.msra.mxu0 0
    %249 = vmatprep.subr.bf16.mxu0 0
    %250 = vmatpush1.bf16.msra.mxu0 0
    %251 = vmatprep.subr.bf16.mxu0 0
    %252 = vmatpush1.bf16.msra.mxu0 0
    %253 = vmatprep.mubr.bf16.mxu0 0
    %254 = vmatmul.mubr.bf16.gmra.mrb[0].mxu0 %v139
    %v255 = vpop.f32.mrb[0].mxu0
    %v256 = vadd.f32 0.0, %v255
    %v257 = vpop.f32.mrb[0].mxu0
    %v258 = vadd.f32 0.0, %v257
    %v259 = vpop.f32.mrb[0].mxu0
    %v260 = vadd.f32 0.0, %v259
    %v261 = vpop.f32.mrb[0].mxu0
    %v262 = vadd.f32 0.0, %v261
    %263 = vdwg.mxu0
    %v264 = vadd.f32 %v256, %v112
    %v265 = vadd.f32 %v260, %v112
    %266 = vst [vmem:[#allocation2] sm:$0xff] %v264
    %267 = vst [vmem:[#allocation2 + $0x8] sm:$0xff] %v265
    %v268 = vadd.f32 %v258, %v113
    %v269 = vadd.f32 %v262, %v113
    %v270 = vmax.f32 %v268, 0.0
    %v271 = vmax.f32 %v269, 0.0
    %v272 = vpack.c.bf16 %v271, %v270
    %v273 = vld [vmem:[#allocation8] sm:$0xff]
    %v274 = vld [vmem:[#allocation8 + $0x8] sm:$0xff]
    %v275 = vld [vmem:[#allocation8 + $0x10] sm:$0xff]
    %v276 = vld [vmem:[#allocation8 + $0x18] sm:$0xff]
    %v277 = vld [vmem:[#allocation8 + $0x20] sm:$0xff]
    %v278 = vld [vmem:[#allocation8 + $0x28] sm:$0xff]
    %v279 = vld [vmem:[#allocation8 + $0x30] sm:$0xff]
    %v280 = vld [vmem:[#allocation8 + $0x38] sm:$0xff]
    %v281 = vld [vmem:[#allocation8 + $0x40] sm:$0xff]
    %v282 = vld [vmem:[#allocation8 + $0x48] sm:$0xff]
    %v283 = vld [vmem:[#allocation8 + $0x50] sm:$0xff]
    %v284 = vld [vmem:[#allocation8 + $0x58] sm:$0xff]
    %v285 = vld [vmem:[#allocation8 + $0x60] sm:$0xff]
    %v286 = vld [vmem:[#allocation8 + $0x68] sm:$0xff]
    %v287 = vld [vmem:[#allocation8 + $0x70] sm:$0xff]
    %v288 = vld [vmem:[#allocation8 + $0x78] sm:$0xff]
    %v290 = vlaneseq
    %v291 = vshrl.u32 %v290, 7
    %v292 = vsub.s32 0, %v291
    %v293 = vrot.slane %v115, %v292
    %v294 = vlaneseq
    %v295 = vshrl.u32 %v294, 7
    %v296 = vsub.s32 1, %v295
    %v297 = vrot.slane %v115, %v296
    %v316 = vunpack.c.l.b16 %v273
    %v317 = vunpack.c.h.b16 %v273
    %v318 = vunpack.c.l.b16 %v274
    %v319 = vunpack.c.h.b16 %v274
    %v320 = vunpack.c.l.b16 %v275
    %v321 = vunpack.c.h.b16 %v275
    %v322 = vunpack.c.l.b16 %v276
    %v323 = vunpack.c.h.b16 %v276
    %v324 = vunpack.c.l.b16 %v277
    %v325 = vunpack.c.h.b16 %v277
    %v326 = vunpack.c.l.b16 %v278
    %v327 = vunpack.c.h.b16 %v278
    %v328 = vunpack.c.l.b16 %v279
    %v329 = vunpack.c.h.b16 %v279
    %v330 = vunpack.c.l.b16 %v280
    %v331 = vunpack.c.h.b16 %v280
    %v332 = vunpack.c.l.b16 %v281
    %v333 = vunpack.c.h.b16 %v281
    %v334 = vunpack.c.l.b16 %v282
    %v335 = vunpack.c.h.b16 %v282
    %v336 = vunpack.c.l.b16 %v283
    %v337 = vunpack.c.h.b16 %v283
    %v338 = vunpack.c.l.b16 %v284
    %v339 = vunpack.c.h.b16 %v284
    %v340 = vunpack.c.l.b16 %v285
    %v341 = vunpack.c.h.b16 %v285
    %v342 = vunpack.c.l.b16 %v286
    %v343 = vunpack.c.h.b16 %v286
    %v344 = vunpack.c.l.b16 %v287
    %v345 = vunpack.c.h.b16 %v287
    %v346 = vunpack.c.l.b16 %v288
    %v347 = vunpack.c.h.b16 %v288
    %v348 = vpack.c.b16 %v318, %v316
    %v349 = vpack.c.b16 %v319, %v317
    %v350 = vpack.c.b16 %v322, %v320
    %v351 = vpack.c.b16 %v323, %v321
    %v352 = vpack.c.b16 %v326, %v324
    %v353 = vpack.c.b16 %v327, %v325
    %v354 = vpack.c.b16 %v330, %v328
    %v355 = vpack.c.b16 %v331, %v329
    %v356 = vpack.c.b16 %v334, %v332
    %v357 = vpack.c.b16 %v335, %v333
    %v358 = vpack.c.b16 %v338, %v336
    %v359 = vpack.c.b16 %v339, %v337
    %v360 = vpack.c.b16 %v342, %v340
    %v361 = vpack.c.b16 %v343, %v341
    %v362 = vpack.c.b16 %v346, %v344
    %v363 = vpack.c.b16 %v347, %v345
    %380 = vmatprep.subr.bf16.mxu0 %v349
    %381 = vmatpush1.bf16.msra.mxu0 %v348
    %382 = vmatprep.subr.bf16.mxu0 %v351
    %383 = vmatpush1.bf16.msra.mxu0 %v350
    %384 = vmatprep.subr.bf16.mxu0 %v353
    %385 = vmatpush1.bf16.msra.mxu0 %v352
    %386 = vmatprep.subr.bf16.mxu0 %v355
    %387 = vmatpush1.bf16.msra.mxu0 %v354
    %388 = vmatprep.subr.bf16.mxu0 %v357
    %389 = vmatpush1.bf16.msra.mxu0 %v356
    %390 = vmatprep.subr.bf16.mxu0 %v359
    %391 = vmatpush1.bf16.msra.mxu0 %v358
    %392 = vmatprep.subr.bf16.mxu0 %v361
    %393 = vmatpush1.bf16.msra.mxu0 %v360
    %394 = vmatprep.subr.bf16.mxu0 %v363
    %395 = vmatpush1.bf16.msra.mxu0 %v362
    %396 = vmatprep.subr.bf16.mxu0 0
    %397 = vmatpush1.bf16.msra.mxu0 0
    %398 = vmatprep.subr.bf16.mxu0 0
    %399 = vmatpush1.bf16.msra.mxu0 0
    %400 = vmatprep.subr.bf16.mxu0 0
    %401 = vmatpush1.bf16.msra.mxu0 0
    %402 = vmatprep.subr.bf16.mxu0 0
    %403 = vmatpush1.bf16.msra.mxu0 0
    %404 = vmatprep.subr.bf16.mxu0 0
    %405 = vmatpush1.bf16.msra.mxu0 0
    %406 = vmatprep.subr.bf16.mxu0 0
    %407 = vmatpush1.bf16.msra.mxu0 0
    %408 = vmatprep.subr.bf16.mxu0 0
    %409 = vmatpush1.bf16.msra.mxu0 0
    %410 = vmatprep.subr.bf16.mxu0 0
    %411 = vmatpush1.bf16.msra.mxu0 0
    %412 = vmatprep.mubr.bf16.mxu0 0
    %413 = vmatmul.mubr.bf16.gmra.mrb[0].mxu0 %v272
    %v414 = vpop.f32.mrb[0].mxu0
    %v415 = vadd.f32 %v293, %v414
    %v416 = vpop.f32.mrb[0].mxu0
    %v417 = vadd.f32 %v297, %v416
    %v418 = vpop.f32.mrb[0].mxu0
    %v419 = vadd.f32 %v293, %v418
    %v420 = vpop.f32.mrb[0].mxu0
    %v421 = vadd.f32 %v297, %v420
    %422 = vdwg.mxu0
    %v423 = vmax.f32 %v415, 0.0
    %v424 = vmax.f32 %v417, 0.0
    %v425 = vmax.f32 %v419, 0.0
    %v426 = vmax.f32 %v421, 0.0
    %v427 = vpack.c.bf16 %v425, %v423
    %v428 = vpack.c.bf16 %v426, %v424
    %v429 = vld [vmem:[#allocation9] sm:$0xf]
    %v430 = vld [vmem:[#allocation9 + $0x4] sm:$0xf]
    %v431 = vld [vmem:[#allocation9 + $0x8] sm:$0xf]
    %v432 = vld [vmem:[#allocation9 + $0xc] sm:$0xf]
    %v433 = vld [vmem:[#allocation9 + $0x10] sm:$0xf]
    %v434 = vld [vmem:[#allocation9 + $0x14] sm:$0xf]
    %v435 = vld [vmem:[#allocation9 + $0x18] sm:$0xf]
    %v436 = vld [vmem:[#allocation9 + $0x1c] sm:$0xf]
    %v437 = vld [vmem:[#allocation9 + $0x20] sm:$0xf]
    %v438 = vld [vmem:[#allocation9 + $0x24] sm:$0xf]
    %v439 = vld [vmem:[#allocation9 + $0x28] sm:$0xf]
    %v440 = vld [vmem:[#allocation9 + $0x2c] sm:$0xf]
    %v441 = vld [vmem:[#allocation9 + $0x30] sm:$0xf]
    %v442 = vld [vmem:[#allocation9 + $0x34] sm:$0xf]
    %v443 = vld [vmem:[#allocation9 + $0x38] sm:$0xf]
    %v444 = vld [vmem:[#allocation9 + $0x3c] sm:$0xf]
    %v445 = vld [vmem:[#allocation9 + $0x40] sm:$0xf]
    %v446 = vld [vmem:[#allocation9 + $0x44] sm:$0xf]
    %v447 = vld [vmem:[#allocation9 + $0x48] sm:$0xf]
    %v448 = vld [vmem:[#allocation9 + $0x4c] sm:$0xf]
    %v449 = vld [vmem:[#allocation9 + $0x50] sm:$0xf]
    %v450 = vld [vmem:[#allocation9 + $0x54] sm:$0xf]
    %v451 = vld [vmem:[#allocation9 + $0x58] sm:$0xf]
    %v452 = vld [vmem:[#allocation9 + $0x5c] sm:$0xf]
    %v453 = vld [vmem:[#allocation9 + $0x60] sm:$0xf]
    %v454 = vld [vmem:[#allocation9 + $0x64] sm:$0xf]
    %v455 = vld [vmem:[#allocation9 + $0x68] sm:$0xf]
    %v456 = vld [vmem:[#allocation9 + $0x6c] sm:$0xf]
    %v457 = vld [vmem:[#allocation9 + $0x70] sm:$0xf]
    %v458 = vld [vmem:[#allocation9 + $0x74] sm:$0xf]
    %v459 = vld [vmem:[#allocation9 + $0x78] sm:$0xf]
    %v460 = vld [vmem:[#allocation9 + $0x7c] sm:$0xf]
    %v493 = vunpack.c.l.b16 %v429
    %v494 = vunpack.c.l.b16 %v430
    %v495 = vunpack.c.l.b16 %v431
    %v496 = vunpack.c.l.b16 %v432
    %v497 = vunpack.c.l.b16 %v433
    %v498 = vunpack.c.l.b16 %v434
    %v499 = vunpack.c.l.b16 %v435
    %v500 = vunpack.c.l.b16 %v436
    %v501 = vunpack.c.l.b16 %v437
    %v502 = vunpack.c.l.b16 %v438
    %v503 = vunpack.c.l.b16 %v439
    %v504 = vunpack.c.l.b16 %v440
    %v505 = vunpack.c.l.b16 %v441
    %v506 = vunpack.c.l.b16 %v442
    %v507 = vunpack.c.l.b16 %v443
    %v508 = vunpack.c.l.b16 %v444
    %v509 = vunpack.c.l.b16 %v445
    %v510 = vunpack.c.l.b16 %v446
    %v511 = vunpack.c.l.b16 %v447
    %v512 = vunpack.c.l.b16 %v448
    %v513 = vunpack.c.l.b16 %v449
    %v514 = vunpack.c.l.b16 %v450
    %v515 = vunpack.c.l.b16 %v451
    %v516 = vunpack.c.l.b16 %v452
    %v517 = vunpack.c.l.b16 %v453
    %v518 = vunpack.c.l.b16 %v454
    %v519 = vunpack.c.l.b16 %v455
    %v520 = vunpack.c.l.b16 %v456
    %v521 = vunpack.c.l.b16 %v457
    %v522 = vunpack.c.l.b16 %v458
    %v523 = vunpack.c.l.b16 %v459
    %v524 = vunpack.c.l.b16 %v460
    %v525 = vpack.c.b16 %v494, %v493
    %v526 = vpack.c.b16 %v496, %v495
    %v527 = vpack.c.b16 %v498, %v497
    %v528 = vpack.c.b16 %v500, %v499
    %v529 = vpack.c.b16 %v502, %v501
    %v530 = vpack.c.b16 %v504, %v503
    %v531 = vpack.c.b16 %v506, %v505
    %v532 = vpack.c.b16 %v508, %v507
    %v533 = vpack.c.b16 %v510, %v509
    %v534 = vpack.c.b16 %v512, %v511
    %v535 = vpack.c.b16 %v514, %v513
    %v536 = vpack.c.b16 %v516, %v515
    %v537 = vpack.c.b16 %v518, %v517
    %v538 = vpack.c.b16 %v520, %v519
    %v539 = vpack.c.b16 %v522, %v521
    %v540 = vpack.c.b16 %v524, %v523
    %557 = vmatprep.subr.bf16.mxu0 0
    %558 = vmatpush1.bf16.msra.mxu0 %v525
    %559 = vmatprep.subr.bf16.mxu0 0
    %560 = vmatpush1.bf16.msra.mxu0 %v526
    %561 = vmatprep.subr.bf16.mxu0 0
    %562 = vmatpush1.bf16.msra.mxu0 %v527
    %563 = vmatprep.subr.bf16.mxu0 0
    %564 = vmatpush1.bf16.msra.mxu0 %v528
    %565 = vmatprep.subr.bf16.mxu0 0
    %566 = vmatpush1.bf16.msra.mxu0 %v529
    %567 = vmatprep.subr.bf16.mxu0 0
    %568 = vmatpush1.bf16.msra.mxu0 %v530
    %569 = vmatprep.subr.bf16.mxu0 0
    %570 = vmatpush1.bf16.msra.mxu0 %v531
    %571 = vmatprep.subr.bf16.mxu0 0
    %572 = vmatpush1.bf16.msra.mxu0 %v532
    %573 = vmatprep.subr.bf16.mxu0 0
    %574 = vmatpush1.bf16.msra.mxu0 %v533
    %575 = vmatprep.subr.bf16.mxu0 0
    %576 = vmatpush1.bf16.msra.mxu0 %v534
    %577 = vmatprep.subr.bf16.mxu0 0
    %578 = vmatpush1.bf16.msra.mxu0 %v535
    %579 = vmatprep.subr.bf16.mxu0 0
    %580 = vmatpush1.bf16.msra.mxu0 %v536
    %581 = vmatprep.subr.bf16.mxu0 0
    %582 = vmatpush1.bf16.msra.mxu0 %v537
    %583 = vmatprep.subr.bf16.mxu0 0
    %584 = vmatpush1.bf16.msra.mxu0 %v538
    %585 = vmatprep.subr.bf16.mxu0 0
    %586 = vmatpush1.bf16.msra.mxu0 %v539
    %587 = vmatprep.subr.bf16.mxu0 0
    %588 = vmatpush1.bf16.msra.mxu0 %v540
    %589 = vmatprep.mubr.bf16.mxu0 %v428
    %590 = vmatmul.mubr.bf16.gmra.mrb[0].mxu0 %v427
    %v591 = vpop.f32.mrb[0].mxu0
    %v592 = vadd.f32 %v116, %v591
    %v593 = vpop.f32.mrb[0].mxu0
    %v594 = vpop.f32.mrb[0].mxu0
    %v595 = vadd.f32 %v116, %v594
    %v596 = vpop.f32.mrb[0].mxu0
    %597 = vdwg.mxu0
    %v598 = vpack.c.bf16 %v595, %v592
    %v599 = vld [vmem:[#allocation11] sm:$0xf]
    %v600 = vld [vmem:[#allocation11 + $0x4] sm:$0xf]
    %v601 = vld [vmem:[#allocation11 + $0x8] sm:$0xf]
    %v602 = vld [vmem:[#allocation11 + $0xc] sm:$0xf]
    %v603 = vld [vmem:[#allocation11 + $0x10] sm:$0xf]
    %v604 = vld [vmem:[#allocation11 + $0x14] sm:$0xf]
    %v605 = vld [vmem:[#allocation11 + $0x18] sm:$0xf]
    %v606 = vld [vmem:[#allocation11 + $0x1c] sm:$0xf]
    %v607 = vld [vmem:[#allocation11 + $0x20] sm:$0xf]
    %v608 = vld [vmem:[#allocation11 + $0x24] sm:$0xf]
    %v609 = vld [vmem:[#allocation11 + $0x28] sm:$0xf]
    %v610 = vld [vmem:[#allocation11 + $0x2c] sm:$0xf]
    %v611 = vld [vmem:[#allocation11 + $0x30] sm:$0xf]
    %v612 = vld [vmem:[#allocation11 + $0x34] sm:$0xf]
    %v613 = vld [vmem:[#allocation11 + $0x38] sm:$0xf]
    %v614 = vld [vmem:[#allocation11 + $0x3c] sm:$0xf]
    %v631 = vunpack.c.l.b16 %v599
    %v632 = vunpack.c.l.b16 %v600
    %v633 = vunpack.c.l.b16 %v601
    %v634 = vunpack.c.l.b16 %v602
    %v635 = vunpack.c.l.b16 %v603
    %v636 = vunpack.c.l.b16 %v604
    %v637 = vunpack.c.l.b16 %v605
    %v638 = vunpack.c.l.b16 %v606
    %v639 = vunpack.c.l.b16 %v607
    %v640 = vunpack.c.l.b16 %v608
    %v641 = vunpack.c.l.b16 %v609
    %v642 = vunpack.c.l.b16 %v610
    %v643 = vunpack.c.l.b16 %v611
    %v644 = vunpack.c.l.b16 %v612
    %v645 = vunpack.c.l.b16 %v613
    %v646 = vunpack.c.l.b16 %v614
    %v647 = vpack.c.b16 %v632, %v631
    %v648 = vpack.c.b16 %v634, %v633
    %v649 = vpack.c.b16 %v636, %v635
    %v650 = vpack.c.b16 %v638, %v637
    %v651 = vpack.c.b16 %v640, %v639
    %v652 = vpack.c.b16 %v642, %v641
    %v653 = vpack.c.b16 %v644, %v643
    %v654 = vpack.c.b16 %v646, %v645
    %663 = vmatprep.subr.bf16.mxu0 0
    %664 = vmatpush1.bf16.msra.mxu0 %v647
    %665 = vmatprep.subr.bf16.mxu0 0
    %666 = vmatpush1.bf16.msra.mxu0 %v648
    %667 = vmatprep.subr.bf16.mxu0 0
    %668 = vmatpush1.bf16.msra.mxu0 %v649
    %669 = vmatprep.subr.bf16.mxu0 0
    %670 = vmatpush1.bf16.msra.mxu0 %v650
    %671 = vmatprep.subr.bf16.mxu0 0
    %672 = vmatpush1.bf16.msra.mxu0 %v651
    %673 = vmatprep.subr.bf16.mxu0 0
    %674 = vmatpush1.bf16.msra.mxu0 %v652
    %675 = vmatprep.subr.bf16.mxu0 0
    %676 = vmatpush1.bf16.msra.mxu0 %v653
    %677 = vmatprep.subr.bf16.mxu0 0
    %678 = vmatpush1.bf16.msra.mxu0 %v654
    %679 = vmatprep.subr.bf16.mxu0 0
    %680 = vmatpush1.bf16.msra.mxu0 0
    %681 = vmatprep.subr.bf16.mxu0 0
    %682 = vmatpush1.bf16.msra.mxu0 0
    %683 = vmatprep.subr.bf16.mxu0 0
    %684 = vmatpush1.bf16.msra.mxu0 0
    %685 = vmatprep.subr.bf16.mxu0 0
    %686 = vmatpush1.bf16.msra.mxu0 0
    %687 = vmatprep.subr.bf16.mxu0 0
    %688 = vmatpush1.bf16.msra.mxu0 0
    %689 = vmatprep.subr.bf16.mxu0 0
    %690 = vmatpush1.bf16.msra.mxu0 0
    %691 = vmatprep.subr.bf16.mxu0 0
    %692 = vmatpush1.bf16.msra.mxu0 0
    %693 = vmatprep.subr.bf16.mxu0 0
    %694 = vmatpush1.bf16.msra.mxu0 0
    %695 = vmatprep.mubr.bf16.mxu0 0
    %696 = vmatmul.mubr.bf16.gmra.mrb[0].mxu0 %v598
    %v697 = vpop.f32.mrb[0].mxu0
    %v698 = vadd.f32 %v117, %v697
    %v699 = vpop.f32.mrb[0].mxu0
    %v700 = vpop.f32.mrb[0].mxu0
    %v701 = vadd.f32 %v117, %v700
    %v702 = vpop.f32.mrb[0].mxu0
    %703 = vdwg.mxu0
    %v704 = vmax.f32 %v698, 0.0
    %v705 = vmax.f32 %v701, 0.0
    %v706 = vpack.c.bf16 %v705, %v704
    %v707 = vld [vmem:[#allocation12] sm:$0xf]
    %v708 = vld [vmem:[#allocation12 + $0x4] sm:$0xf]
    %v709 = vld [vmem:[#allocation12 + $0x8] sm:$0xf]
    %v710 = vld [vmem:[#allocation12 + $0xc] sm:$0xf]
    %v711 = vld [vmem:[#allocation12 + $0x10] sm:$0xf]
    %v712 = vld [vmem:[#allocation12 + $0x14] sm:$0xf]
    %v713 = vld [vmem:[#allocation12 + $0x18] sm:$0xf]
    %v714 = vld [vmem:[#allocation12 + $0x1c] sm:$0xf]
    %v715 = vld [vmem:[#allocation12 + $0x20] sm:$0xf]
    %v716 = vld [vmem:[#allocation12 + $0x24] sm:$0xf]
    %v717 = vld [vmem:[#allocation12 + $0x28] sm:$0xf]
    %v718 = vld [vmem:[#allocation12 + $0x2c] sm:$0xf]
    %v719 = vld [vmem:[#allocation12 + $0x30] sm:$0xf]
    %v720 = vld [vmem:[#allocation12 + $0x34] sm:$0xf]
    %v721 = vld [vmem:[#allocation12 + $0x38] sm:$0xf]
    %v722 = vld [vmem:[#allocation12 + $0x3c] sm:$0xf]
    %v739 = vunpack.c.l.b16 %v707
    %v740 = vunpack.c.l.b16 %v708
    %v741 = vunpack.c.l.b16 %v709
    %v742 = vunpack.c.l.b16 %v710
    %v743 = vunpack.c.l.b16 %v711
    %v744 = vunpack.c.l.b16 %v712
    %v745 = vunpack.c.l.b16 %v713
    %v746 = vunpack.c.l.b16 %v714
    %v747 = vunpack.c.l.b16 %v715
    %v748 = vunpack.c.l.b16 %v716
    %v749 = vunpack.c.l.b16 %v717
    %v750 = vunpack.c.l.b16 %v718
    %v751 = vunpack.c.l.b16 %v719
    %v752 = vunpack.c.l.b16 %v720
    %v753 = vunpack.c.l.b16 %v721
    %v754 = vunpack.c.l.b16 %v722
    %v755 = vpack.c.b16 %v740, %v739
    %v756 = vpack.c.b16 %v742, %v741
    %v757 = vpack.c.b16 %v744, %v743
    %v758 = vpack.c.b16 %v746, %v745
    %v759 = vpack.c.b16 %v748, %v747
    %v760 = vpack.c.b16 %v750, %v749
    %v761 = vpack.c.b16 %v752, %v751
    %v762 = vpack.c.b16 %v754, %v753
    %771 = vmatprep.subr.bf16.mxu0 0
    %772 = vmatpush1.bf16.msra.mxu0 %v755
    %773 = vmatprep.subr.bf16.mxu0 0
    %774 = vmatpush1.bf16.msra.mxu0 %v756
    %775 = vmatprep.subr.bf16.mxu0 0
    %776 = vmatpush1.bf16.msra.mxu0 %v757
    %777 = vmatprep.subr.bf16.mxu0 0
    %778 = vmatpush1.bf16.msra.mxu0 %v758
    %779 = vmatprep.subr.bf16.mxu0 0
    %780 = vmatpush1.bf16.msra.mxu0 %v759
    %781 = vmatprep.subr.bf16.mxu0 0
    %782 = vmatpush1.bf16.msra.mxu0 %v760
    %783 = vmatprep.subr.bf16.mxu0 0
    %784 = vmatpush1.bf16.msra.mxu0 %v761
    %785 = vmatprep.subr.bf16.mxu0 0
    %786 = vmatpush1.bf16.msra.mxu0 %v762
    %787 = vmatprep.subr.bf16.mxu0 0
    %788 = vmatpush1.bf16.msra.mxu0 0
    %789 = vmatprep.subr.bf16.mxu0 0
    %790 = vmatpush1.bf16.msra.mxu0 0
    %791 = vmatprep.subr.bf16.mxu0 0
    %792 = vmatpush1.bf16.msra.mxu0 0
    %793 = vmatprep.subr.bf16.mxu0 0
    %794 = vmatpush1.bf16.msra.mxu0 0
    %795 = vmatprep.subr.bf16.mxu0 0
    %796 = vmatpush1.bf16.msra.mxu0 0
    %797 = vmatprep.subr.bf16.mxu0 0
    %798 = vmatpush1.bf16.msra.mxu0 0
    %799 = vmatprep.subr.bf16.mxu0 0
    %800 = vmatpush1.bf16.msra.mxu0 0
    %801 = vmatprep.subr.bf16.mxu0 0
    %802 = vmatpush1.bf16.msra.mxu0 0
    %803 = vmatprep.mubr.bf16.mxu0 0
    %804 = vmatmul.mubr.bf16.gmra.mrb[0].mxu0 %v706
    %v805 = vpop.f32.mrb[0].mxu0
    %v806 = vadd.f32 %v118, %v805
    %v807 = vpop.f32.mrb[0].mxu0
    %v808 = vpop.f32.mrb[0].mxu0
    %v809 = vadd.f32 %v118, %v808
    %v810 = vpop.f32.mrb[0].mxu0
    %811 = vdwg.mxu0
    %v812 = vsub.f32 0.0, %v806
    %v813 = vsub.f32 0.0, %v809
    %v814 = vmul.f32 %v812, 1.442695
    %v815 = vpow.pop %v814
    %v816 = vmul.f32 %v813, 1.442695
    %v817 = vpow.pop %v816
    %v818 = vadd.f32 %v815, 1.0
    %v819 = vadd.f32 %v817, 1.0
    %v820 = vrcp.pop %v818
    %v821 = vrcp.pop %v819
    %v822 = vmul.f32 %v592, %v820
    %v823 = vmul.f32 %v595, %v821
    %v824 = vld [vmem:[#allocation2] sm:$0xff]
    %v825 = vld [vmem:[#allocation2 + $0x8] sm:$0xff]
    %v826 = vadd.f32 %v822, %v824
    %v827 = vadd.f32 %v823, %v825
    %v828 = vmax.f32 %v826, 0.0
    %v829 = vmax.f32 %v827, 0.0
    %830 = vst [vmem:[#allocation14] sm:$0xff] %v828
    %831 = vst [vmem:[#allocation14 + $0x8] sm:$0xff] %v829
    // Predicated region
    $region54: #{tpu_custom_call.1} parent=1 // pred_check
      _
    $region55: #{tpu_custom_call.1} parent=1 // pred_check_branch
      %833 = sbr.rel (0) target = $region57
    $region56: #{tpu_custom_call.1} parent=1 // pred_region
      %s835 = ssub.s32 256, 256
      %836 = vsyncadd [#allocation5], %s835
      %s837 = sshll.u32 [#allocation14], 4
      %s838 = int_to_ptr.vmem [resolvable:$true] %s837
      %843 = dma.vmem_to_hbm [thread:$0]  %s838, 256, %s7, [#allocation5], 128, 128, 8
    $region57: #{tpu_custom_call.1} parent=1 // pred_fallthru
      _
    // Predicated region
    $region58: #{tpu_custom_call.1} parent=1 // pred_check
      _
    $region59: #{tpu_custom_call.1} parent=1 // pred_check_branch
      %845 = sbr.rel (0) target = $region61
    $region60: #{tpu_custom_call.1} parent=1 // pred_region
      %846 = dma.done [#allocation5], 256
    $region61: #{tpu_custom_call.1} parent=1 // pred_fallthru
      _
    %847 = vsyncpa [#allocation4], 1
    %848 = vsyncpa [#allocation7], 1
    %849 = vsyncpa [#allocation10], 1
    %850 = vsyncpa [#allocation13], 1
    %851 = vsyncpa [#allocation5], 1

// kernel: tpu_custom_call.1
$region0: #{tpu_custom_call.1}
  #allocation0 [shape = 'u32[]', space=smem, size = 0x4, offset = 0x4, fixed_abs, tag = 'smem constant byte address 0x4 - core index']
  #allocation1 [shape = 'u32[144,128]{1,0:T(1,128)}', space=vmem, size = 0x12000, scoped, tag = 'internal scratch']
  #allocation2 [shape = 'f32[16,128]{1,0:T(8,128)}', space=vmem, size = 0x2000, scoped, tag = 'scratch operand']
  %s0 = inlined_call_operand.hbm [shape: bf16[16,128], index: 0, kind: input, shape index: {}]
  %s1 = inlined_call_operand.hbm [shape: bf16[128,256], index: 1, kind: input, shape index: {}]
  %s2 = inlined_call_operand.hbm [shape: bf16[128,256], index: 2, kind: input, shape index: {}]
  %s3 = inlined_call_operand.hbm [shape: bf16[256,128], index: 3, kind: input, shape index: {}]
  %s4 = inlined_call_operand.hbm [shape: bf16[128,128], index: 4, kind: input, shape index: {}]
  %s5 = inlined_call_operand.hbm [shape: bf16[128,128], index: 5, kind: input, shape index: {}]
  %s6 = inlined_call_operand.vmem [shape: f32[8,256], index: 6, kind: input, shape index: {}]
  %s7 = inlined_call_operand.hbm [shape: f32[16,128], index: 7, kind: output, shape index: {}]
  %s8 = sld [smem:[#allocation0]]
  $region62: #{tpu_custom_call.1} parent=0
    _
  %s10 = ssub.s32 1, %s8
  %s11 = scalar_select 0, %s10, %s8
  $region1: #{tpu_custom_call.1} parent=0
    #allocation3 [shape = 'u8[4096]{0}', space=vmem, size = 0x1000, scoped, tag = 'input window, operand 0, single buffered']
    #allocation4 [shape = 's32[1]{0}', space=sflag, size = 0x4, scoped, tag = 'scoped memory for tpu_custom_call.1']
    #allocation5 [shape = 's32[1]{0}', space=sflag, size = 0x4, scoped, tag = 'scoped memory for tpu_custom_call.1']
    #allocation6 [shape = 'u8[65536]{0}', space=vmem, size = 0x10000, scoped, tag = 'input window, operand 1, single buffered']
    #allocation7 [shape = 's32[1]{0}', space=sflag, size = 0x4, scoped, tag = 'scoped memory for tpu_custom_call.1']
    #allocation8 [shape = 'u8[65536]{0}', space=vmem, size = 0x10000, scoped, tag = 'input window, operand 2, single buffered']
    #allocation9 [shape = 'u8[65536]{0}', space=vmem, size = 0x10000, scoped, tag = 'input window, operand 3, single buffered']
    #allocation10 [shape = 's32[1]{0}', space=sflag, size = 0x4, scoped, tag = 'scoped memory for tpu_custom_call.1']
    #allocation11 [shape = 'u8[32768]{0}', space=vmem, size = 0x8000, scoped, tag = 'input window, operand 4, single buffered']
    #allocation12 [shape = 'u8[32768]{0}', space=vmem, size = 0x8000, scoped, tag = 'input window, operand 5, single buffered']
    #allocation13 [shape = 's32[1]{0}', space=sflag, size = 0x4, scoped, tag = 'scoped memory for tpu_custom_call.1']
    #allocation14 [shape = 'u8[8192]{0}', space=vmem, size = 0x2000, scoped, tag = 'output window, operand 0, single buffered']
    %12 = vsyncpa [#allocation4], 0
    %13 = vsyncpa [#allocation7], 0
    %14 = vsyncpa [#allocation10], 0
    %15 = vsyncpa [#allocation13], 0
    %16 = vsyncpa [#allocation5], 0
    // Predicated region
    $region2: #{tpu_custom_call.1} parent=1 // pred_check
      _
    $region3: #{tpu_custom_call.1} parent=1 // pred_check_branch
      %18 = sbr.rel (0) target = $region5
    $region4: #{tpu_custom_call.1} parent=1 // pred_region
      %s20 = ssub.s32 128, 128
      %21 = vsyncadd [#allocation4], %s20
      %s22 = sshll.u32 [#allocation3], 4
      %s23 = int_to_ptr.vmem [resolvable:$true] %s22
      %28 = dma.hbm_to_vmem [thread:$0]  %s0, 128, %s23, [#allocation4], 64, 64, 4
    $region5: #{tpu_custom_call.1} parent=1 // pred_fallthru
      _
    // Predicated region
    $region6: #{tpu_custom_call.1} parent=1 // pred_check
      _
    $region7: #{tpu_custom_call.1} parent=1 // pred_check_branch
      %30 = sbr.rel (0) target = $region9
    $region8: #{tpu_custom_call.1} parent=1 // pred_region
      %s32 = ssub.s32 2048, 2048
      %33 = vsyncadd [#allocation7], %s32
      %s34 = sshll.u32 [#allocation6], 4
      %s35 = int_to_ptr.vmem [resolvable:$true] %s34
      %40 = dma.hbm_to_vmem [thread:$0]  %s1, 2048, %s35, [#allocation7], 128, 128, 8
    $region9: #{tpu_custom_call.1} parent=1 // pred_fallthru
      _
    // Predicated region
    $region10: #{tpu_custom_call.1} parent=1 // pred_check
      _
    $region11: #{tpu_custom_call.1} parent=1 // pred_check_branch
      %42 = sbr.rel (0) target = $region13
    $region12: #{tpu_custom_call.1} parent=1 // pred_region
      %s44 = ssub.s32 2048, 2048
      %45 = vsyncadd [#allocation7], %s44
      %s46 = sshll.u32 [#allocation8], 4
      %s47 = int_to_ptr.vmem [resolvable:$true] %s46
      %52 = dma.hbm_to_vmem [thread:$0]  %s2, 2048, %s47, [#allocation7], 128, 128, 8
    $region13: #{tpu_custom_call.1} parent=1 // pred_fallthru
      _
    // Predicated region
    $region14: #{tpu_custom_call.1} parent=1 // pred_check
      _
    $region15: #{tpu_custom_call.1} parent=1 // pred_check_branch
      %54 = sbr.rel (0) target = $region17
    $region16: #{tpu_custom_call.1} parent=1 // pred_region
      %s56 = ssub.s32 2048, 2048
      %57 = vsyncadd [#allocation10], %s56
      %s58 = sshll.u32 [#allocation9], 4
      %s59 = int_to_ptr.vmem [resolvable:$true] %s58
      %64 = dma.hbm_to_vmem [thread:$0]  %s3, 2048, %s59, [#allocation10], 64, 64, 4
    $region17: #{tpu_custom_call.1} parent=1 // pred_fallthru
      _
    // Predicated region
    $region18: #{tpu_custom_call.1} parent=1 // pred_check
      _
    $region19: #{tpu_custom_call.1} parent=1 // pred_check_branch
      %66 = sbr.rel (0) target = $region21
    $region20: #{tpu_custom_call.1} parent=1 // pred_region
      %s68 = ssub.s32 1024, 1024
      %69 = vsyncadd [#allocation10], %s68
      %s70 = sshll.u32 [#allocation11], 4
      %s71 = int_to_ptr.vmem [resolvable:$true] %s70
      %76 = dma.hbm_to_vmem [thread:$0]  %s4, 1024, %s71, [#allocation10], 64, 64, 4
    $region21: #{tpu_custom_call.1} parent=1 // pred_fallthru
      _
    // Predicated region
    $region22: #{tpu_custom_call.1} parent=1 // pred_check
      _
    $region23: #{tpu_custom_call.1} parent=1 // pred_check_branch
      %78 = sbr.rel (0) target = $region25
    $region24: #{tpu_custom_call.1} parent=1 // pred_region
      %s80 = ssub.s32 1024, 1024
      %81 = vsyncadd [#allocation13], %s80
      %s82 = sshll.u32 [#allocation12], 4
      %s83 = int_to_ptr.vmem [resolvable:$true] %s82
      %88 = dma.hbm_to_vmem [thread:$0]  %s5, 1024, %s83, [#allocation13], 64, 64, 4
    $region25: #{tpu_custom_call.1} parent=1 // pred_fallthru
      _
    // Predicated region
    $region26: #{tpu_custom_call.1} parent=1 // pred_check
      _
    $region27: #{tpu_custom_call.1} parent=1 // pred_check_branch
      %90 = sbr.rel (0) target = $region29
    $region28: #{tpu_custom_call.1} parent=1 // pred_region
      _
    $region29: #{tpu_custom_call.1} parent=1 // pred_fallthru
      _
    // Predicated region
    $region30: #{tpu_custom_call.1} parent=1 // pred_check
      _
    $region31: #{tpu_custom_call.1} parent=1 // pred_check_branch
      %92 = sbr.rel (0) target = $region33
    $region32: #{tpu_custom_call.1} parent=1 // pred_region
      %93 = dma.done [#allocation4], 128
    $region33: #{tpu_custom_call.1} parent=1 // pred_fallthru
      _
    // Predicated region
    $region34: #{tpu_custom_call.1} parent=1 // pred_check
      _
    $region35: #{tpu_custom_call.1} parent=1 // pred_check_branch
      %95 = sbr.rel (0) target = $region37
    $region36: #{tpu_custom_call.1} parent=1 // pred_region
      %96 = dma.done [#allocation7], 2048
    $region37: #{tpu_custom_call.1} parent=1 // pred_fallthru
      _
    // Predicated region
    $region38: #{tpu_custom_call.1} parent=1 // pred_check
      _
    $region39: #{tpu_custom_call.1} parent=1 // pred_check_branch
      %98 = sbr.rel (0) target = $region41
    $region40: #{tpu_custom_call.1} parent=1 // pred_region
      %99 = dma.done [#allocation7], 2048
    $region41: #{tpu_custom_call.1} parent=1 // pred_fallthru
      _
    // Predicated region
    $region42: #{tpu_custom_call.1} parent=1 // pred_check
      _
    $region43: #{tpu_custom_call.1} parent=1 // pred_check_branch
      %101 = sbr.rel (0) target = $region45
    $region44: #{tpu_custom_call.1} parent=1 // pred_region
      %102 = dma.done [#allocation10], 2048
    $region45: #{tpu_custom_call.1} parent=1 // pred_fallthru
      _
    // Predicated region
    $region46: #{tpu_custom_call.1} parent=1 // pred_check
      _
    $region47: #{tpu_custom_call.1} parent=1 // pred_check_branch
      %104 = sbr.rel (0) target = $region49
    $region48: #{tpu_custom_call.1} parent=1 // pred_region
      %105 = dma.done [#allocation10], 1024
    $region49: #{tpu_custom_call.1} parent=1 // pred_fallthru
      _
    // Predicated region
    $region50: #{tpu_custom_call.1} parent=1 // pred_check
      _
    $region51: #{tpu_custom_call.1} parent=1 // pred_check_branch
      %107 = sbr.rel (0) target = $region53
    $region52: #{tpu_custom_call.1} parent=1 // pred_region
      %108 = dma.done [#allocation13], 1024
    $region53: #{tpu_custom_call.1} parent=1 // pred_fallthru
      _
    %v110 = vld [vmem:[#allocation3] sm:$0xf]
    %v111 = vld [vmem:[#allocation3 + $0x4] sm:$0xf]
    %v112 = vld [vmem:[%s6] ss:$0 sm:$0xff]
    %v113 = vld [vmem:[%s6 + $0x1] ss:$0 sm:$0xff]
    %s114 = scalar_lea.vmem %s6, 2
    %v115 = vld [vmem:[%s114] ss:$8 sm:$0x3]
    %v116 = vld [vmem:[%s6 + $0x3] ss:$0 sm:$0xff]
    %v117 = vld [vmem:[%s6 + $0x4] ss:$0 sm:$0xff]
    %v118 = vld [vmem:[%s6 + $0x5] ss:$0 sm:$0xff]
    %v119 = vld [vmem:[#allocation6] sm:$0xff]
    %v120 = vld [vmem:[#allocation6 + $0x8] sm:$0xff]
    %v121 = vld [vmem:[#allocation6 + $0x10] sm:$0xff]
    %v122 = vld [vmem:[#allocation6 + $0x18] sm:$0xff]
    %v123 = vld [vmem:[#allocation6 + $0x20] sm:$0xff]
    %v124 = vld [vmem:[#allocation6 + $0x28] sm:$0xff]
    %v125 = vld [vmem:[#allocation6 + $0x30] sm:$0xff]
    %v126 = vld [vmem:[#allocation6 + $0x38] sm:$0xff]
    %v127 = vld [vmem:[#allocation6 + $0x40] sm:$0xff]
    %v128 = vld [vmem:[#allocation6 + $0x48] sm:$0xff]
    %v129 = vld [vmem:[#allocation6 + $0x50] sm:$0xff]
    %v130 = vld [vmem:[#allocation6 + $0x58] sm:$0xff]
    %v131 = vld [vmem:[#allocation6 + $0x60] sm:$0xff]
    %v132 = vld [vmem:[#allocation6 + $0x68] sm:$0xff]
    %v133 = vld [vmem:[#allocation6 + $0x70] sm:$0xff]
    %v134 = vld [vmem:[#allocation6 + $0x78] sm:$0xff]
    %v137 = vunpack.c.l.b16 %v110
    %v138 = vunpack.c.l.b16 %v111
    %v139 = vpack.c.b16 %v138, %v137
    %v157 = vunpack.c.l.b16 %v119
    %v158 = vunpack.c.h.b16 %v119
    %v159 = vunpack.c.l.b16 %v120
    %v160 = vunpack.c.h.b16 %v120
    %v161 = vunpack.c.l.b16 %v121
    %v162 = vunpack.c.h.b16 %v121
    %v163 = vunpack.c.l.b16 %v122
    %v164 = vunpack.c.h.b16 %v122
    %v165 = vunpack.c.l.b16 %v123
    %v166 = vunpack.c.h.b16 %v123
    %v167 = vunpack.c.l.b16 %v124
    %v168 = vunpack.c.h.b16 %v124
    %v169 = vunpack.c.l.b16 %v125
    %v170 = vunpack.c.h.b16 %v125
    %v171 = vunpack.c.l.b16 %v126
    %v172 = vunpack.c.h.b16 %v126
    %v173 = vunpack.c.l.b16 %v127
    %v174 = vunpack.c.h.b16 %v127
    %v175 = vunpack.c.l.b16 %v128
    %v176 = vunpack.c.h.b16 %v128
    %v177 = vunpack.c.l.b16 %v129
    %v178 = vunpack.c.h.b16 %v129
    %v179 = vunpack.c.l.b16 %v130
    %v180 = vunpack.c.h.b16 %v130
    %v181 = vunpack.c.l.b16 %v131
    %v182 = vunpack.c.h.b16 %v131
    %v183 = vunpack.c.l.b16 %v132
    %v184 = vunpack.c.h.b16 %v132
    %v185 = vunpack.c.l.b16 %v133
    %v186 = vunpack.c.h.b16 %v133
    %v187 = vunpack.c.l.b16 %v134
    %v188 = vunpack.c.h.b16 %v134
    %v189 = vpack.c.b16 %v159, %v157
    %v190 = vpack.c.b16 %v160, %v158
    %v191 = vpack.c.b16 %v163, %v161
    %v192 = vpack.c.b16 %v164, %v162
    %v193 = vpack.c.b16 %v167, %v165
    %v194 = vpack.c.b16 %v168, %v166
    %v195 = vpack.c.b16 %v171, %v169
    %v196 = vpack.c.b16 %v172, %v170
    %v197 = vpack.c.b16 %v175, %v173
    %v198 = vpack.c.b16 %v176, %v174
    %v199 = vpack.c.b16 %v179, %v177
    %v200 = vpack.c.b16 %v180, %v178
    %v201 = vpack.c.b16 %v183, %v181
    %v202 = vpack.c.b16 %v184, %v182
    %v203 = vpack.c.b16 %v187, %v185
    %v204 = vpack.c.b16 %v188, %v186
    %221 = vmatprep.subr.bf16.mxu0 %v190
    %222 = vmatpush1.bf16.msra.mxu0 %v189
    %223 = vmatprep.subr.bf16.mxu0 %v192
    %224 = vmatpush1.bf16.msra.mxu0 %v191
    %225 = vmatprep.subr.bf16.mxu0 %v194
    %226 = vmatpush1.bf16.msra.mxu0 %v193
    %227 = vmatprep.subr.bf16.mxu0 %v196
    %228 = vmatpush1.bf16.msra.mxu0 %v195
    %229 = vmatprep.subr.bf16.mxu0 %v198
    %230 = vmatpush1.bf16.msra.mxu0 %v197
    %231 = vmatprep.subr.bf16.mxu0 %v200
    %232 = vmatpush1.bf16.msra.mxu0 %v199
    %233 = vmatprep.subr.bf16.mxu0 %v202
    %234 = vmatpush1.bf16.msra.mxu0 %v201
    %235 = vmatprep.subr.bf16.mxu0 %v204
    %236 = vmatpush1.bf16.msra.mxu0 %v203
    %237 = vmatprep.subr.bf16.mxu0 0
    %238 = vmatpush1.bf16.msra.mxu0 0
    %239 = vmatprep.subr.bf16.mxu0 0
    %240 = vmatpush1.bf16.msra.mxu0 0
    %241 = vmatprep.subr.bf16.mxu0 0
    %242 = vmatpush1.bf16.msra.mxu0 0
    %243 = vmatprep.subr.bf16.mxu0 0
    %244 = vmatpush1.bf16.msra.mxu0 0
    %245 = vmatprep.subr.bf16.mxu0 0
    %246 = vmatpush1.bf16.msra.mxu0 0
    %247 = vmatprep.subr.bf16.mxu0 0
    %248 = vmatpush1.bf16.msra.mxu0 0
    %249 = vmatprep.subr.bf16.mxu0 0
    %250 = vmatpush1.bf16.msra.mxu0 0
    %251 = vmatprep.subr.bf16.mxu0 0
    %252 = vmatpush1.bf16.msra.mxu0 0
    %253 = vmatprep.mubr.bf16.mxu0 0
    %254 = vmatmul.mubr.bf16.gmra.mrb[0].mxu0 %v139
    %v255 = vpop.f32.mrb[0].mxu0
    %v256 = vadd.f32 0.0, %v255
    %v257 = vpop.f32.mrb[0].mxu0
    %v258 = vadd.f32 0.0, %v257
    %v259 = vpop.f32.mrb[0].mxu0
    %v260 = vadd.f32 0.0, %v259
    %v261 = vpop.f32.mrb[0].mxu0
    %v262 = vadd.f32 0.0, %v261
    %263 = vdwg.mxu0
    %v264 = vadd.f32 %v256, %v112
    %v265 = vadd.f32 %v260, %v112
    %266 = vst [vmem:[#allocation2] sm:$0xff] %v264
    %267 = vst [vmem:[#allocation2 + $0x8] sm:$0xff] %v265
    %v268 = vadd.f32 %v258, %v113
    %v269 = vadd.f32 %v262, %v113
    %v270 = vmax.f32 %v268, 0.0
    %v271 = vmax.f32 %v269, 0.0
    %v272 = vpack.c.bf16 %v271, %v270
    %v273 = vld [vmem:[#allocation8] sm:$0xff]
    %v274 = vld [vmem:[#allocation8 + $0x8] sm:$0xff]
    %v275 = vld [vmem:[#allocation8 + $0x10] sm:$0xff]
    %v276 = vld [vmem:[#allocation8 + $0x18] sm:$0xff]
    %v277 = vld [vmem:[#allocation8 + $0x20] sm:$0xff]
    %v278 = vld [vmem:[#allocation8 + $0x28] sm:$0xff]
    %v279 = vld [vmem:[#allocation8 + $0x30] sm:$0xff]
    %v280 = vld [vmem:[#allocation8 + $0x38] sm:$0xff]
    %v281 = vld [vmem:[#allocation8 + $0x40] sm:$0xff]
    %v282 = vld [vmem:[#allocation8 + $0x48] sm:$0xff]
    %v283 = vld [vmem:[#allocation8 + $0x50] sm:$0xff]
    %v284 = vld [vmem:[#allocation8 + $0x58] sm:$0xff]
    %v285 = vld [vmem:[#allocation8 + $0x60] sm:$0xff]
    %v286 = vld [vmem:[#allocation8 + $0x68] sm:$0xff]
    %v287 = vld [vmem:[#allocation8 + $0x70] sm:$0xff]
    %v288 = vld [vmem:[#allocation8 + $0x78] sm:$0xff]
    %v290 = vlaneseq
    %v291 = vshrl.u32 %v290, 7
    %v292 = vsub.s32 0, %v291
    %v293 = vrot.slane %v115, %v292
    %v294 = vlaneseq
    %v295 = vshrl.u32 %v294, 7
    %v296 = vsub.s32 1, %v295
    %v297 = vrot.slane %v115, %v296
    %v316 = vunpack.c.l.b16 %v273
    %v317 = vunpack.c.h.b16 %v273
    %v318 = vunpack.c.l.b16 %v274
    %v319 = vunpack.c.h.b16 %v274
    %v320 = vunpack.c.l.b16 %v275
    %v321 = vunpack.c.h.b16 %v275
    %v322 = vunpack.c.l.b16 %v276
    %v323 = vunpack.c.h.b16 %v276
    %v324 = vunpack.c.l.b16 %v277
    %v325 = vunpack.c.h.b16 %v277
    %v326 = vunpack.c.l.b16 %v278
    %v327 = vunpack.c.h.b16 %v278
    %v328 = vunpack.c.l.b16 %v279
    %v329 = vunpack.c.h.b16 %v279
    %v330 = vunpack.c.l.b16 %v280
    %v331 = vunpack.c.h.b16 %v280
    %v332 = vunpack.c.l.b16 %v281
    %v333 = vunpack.c.h.b16 %v281
    %v334 = vunpack.c.l.b16 %v282
    %v335 = vunpack.c.h.b16 %v282
    %v336 = vunpack.c.l.b16 %v283
    %v337 = vunpack.c.h.b16 %v283
    %v338 = vunpack.c.l.b16 %v284
    %v339 = vunpack.c.h.b16 %v284
    %v340 = vunpack.c.l.b16 %v285
    %v341 = vunpack.c.h.b16 %v285
    %v342 = vunpack.c.l.b16 %v286
    %v343 = vunpack.c.h.b16 %v286
    %v344 = vunpack.c.l.b16 %v287
    %v345 = vunpack.c.h.b16 %v287
    %v346 = vunpack.c.l.b16 %v288
    %v347 = vunpack.c.h.b16 %v288
    %v348 = vpack.c.b16 %v318, %v316
    %v349 = vpack.c.b16 %v319, %v317
    %v350 = vpack.c.b16 %v322, %v320
    %v351 = vpack.c.b16 %v323, %v321
    %v352 = vpack.c.b16 %v326, %v324
    %v353 = vpack.c.b16 %v327, %v325
    %v354 = vpack.c.b16 %v330, %v328
    %v355 = vpack.c.b16 %v331, %v329
    %v356 = vpack.c.b16 %v334, %v332
    %v357 = vpack.c.b16 %v335, %v333
    %v358 = vpack.c.b16 %v338, %v336
    %v359 = vpack.c.b16 %v339, %v337
    %v360 = vpack.c.b16 %v342, %v340
    %v361 = vpack.c.b16 %v343, %v341
    %v362 = vpack.c.b16 %v346, %v344
    %v363 = vpack.c.b16 %v347, %v345
    %380 = vmatprep.subr.bf16.mxu0 %v349
    %381 = vmatpush1.bf16.msra.mxu0 %v348
    %382 = vmatprep.subr.bf16.mxu0 %v351
    %383 = vmatpush1.bf16.msra.mxu0 %v350
    %384 = vmatprep.subr.bf16.mxu0 %v353
    %385 = vmatpush1.bf16.msra.mxu0 %v352
    %386 = vmatprep.subr.bf16.mxu0 %v355
    %387 = vmatpush1.bf16.msra.mxu0 %v354
    %388 = vmatprep.subr.bf16.mxu0 %v357
    %389 = vmatpush1.bf16.msra.mxu0 %v356
    %390 = vmatprep.subr.bf16.mxu0 %v359
    %391 = vmatpush1.bf16.msra.mxu0 %v358
    %392 = vmatprep.subr.bf16.mxu0 %v361
    %393 = vmatpush1.bf16.msra.mxu0 %v360
    %394 = vmatprep.subr.bf16.mxu0 %v363
    %395 = vmatpush1.bf16.msra.mxu0 %v362
    %396 = vmatprep.subr.bf16.mxu0 0
    %397 = vmatpush1.bf16.msra.mxu0 0
    %398 = vmatprep.subr.bf16.mxu0 0
    %399 = vmatpush1.bf16.msra.mxu0 0
    %400 = vmatprep.subr.bf16.mxu0 0
    %401 = vmatpush1.bf16.msra.mxu0 0
    %402 = vmatprep.subr.bf16.mxu0 0
    %403 = vmatpush1.bf16.msra.mxu0 0
    %404 = vmatprep.subr.bf16.mxu0 0
    %405 = vmatpush1.bf16.msra.mxu0 0
    %406 = vmatprep.subr.bf16.mxu0 0
    %407 = vmatpush1.bf16.msra.mxu0 0
    %408 = vmatprep.subr.bf16.mxu0 0
    %409 = vmatpush1.bf16.msra.mxu0 0
    %410 = vmatprep.subr.bf16.mxu0 0
    %411 = vmatpush1.bf16.msra.mxu0 0
    %412 = vmatprep.mubr.bf16.mxu0 0
    %413 = vmatmul.mubr.bf16.gmra.mrb[0].mxu0 %v272
    %v414 = vpop.f32.mrb[0].mxu0
    %v415 = vadd.f32 %v293, %v414
    %v416 = vpop.f32.mrb[0].mxu0
    %v417 = vadd.f32 %v297, %v416
    %v418 = vpop.f32.mrb[0].mxu0
    %v419 = vadd.f32 %v293, %v418
    %v420 = vpop.f32.mrb[0].mxu0
    %v421 = vadd.f32 %v297, %v420
    %422 = vdwg.mxu0
    %v423 = vmax.f32 %v415, 0.0
    %v424 = vmax.f32 %v417, 0.0
    %v425 = vmax.f32 %v419, 0.0
    %v426 = vmax.f32 %v421, 0.0
    %v427 = vpack.c.bf16 %v425, %v423
    %v428 = vpack.c.bf16 %v426, %v424
    %v429 = vld [vmem:[#allocation9] sm:$0xf]
    %v430 = vld [vmem:[#allocation9 + $0x4] sm:$0xf]
    %v431 = vld [vmem:[#allocation9 + $0x8] sm:$0xf]
    %v432 = vld [vmem:[#allocation9 + $0xc] sm:$0xf]
    %v433 = vld [vmem:[#allocation9 + $0x10] sm:$0xf]
    %v434 = vld [vmem:[#allocation9 + $0x14] sm:$0xf]
    %v435 = vld [vmem:[#allocation9 + $0x18] sm:$0xf]
    %v436 = vld [vmem:[#allocation9 + $0x1c] sm:$0xf]
    %v437 = vld [vmem:[#allocation9 + $0x20] sm:$0xf]
    %v438 = vld [vmem:[#allocation9 + $0x24] sm:$0xf]
    %v439 = vld [vmem:[#allocation9 + $0x28] sm:$0xf]
    %v440 = vld [vmem:[#allocation9 + $0x2c] sm:$0xf]
    %v441 = vld [vmem:[#allocation9 + $0x30] sm:$0xf]
    %v442 = vld [vmem:[#allocation9 + $0x34] sm:$0xf]
    %v443 = vld [vmem:[#allocation9 + $0x38] sm:$0xf]
    %v444 = vld [vmem:[#allocation9 + $0x3c] sm:$0xf]
    %v445 = vld [vmem:[#allocation9 + $0x40] sm:$0xf]
    %v446 = vld [vmem:[#allocation9 + $0x44] sm:$0xf]
    %v447 = vld [vmem:[#allocation9 + $0x48] sm:$0xf]
    %v448 = vld [vmem:[#allocation9 + $0x4c] sm:$0xf]
    %v449 = vld [vmem:[#allocation9 + $0x50] sm:$0xf]
    %v450 = vld [vmem:[#allocation9 + $0x54] sm:$0xf]
    %v451 = vld [vmem:[#allocation9 + $0x58] sm:$0xf]
    %v452 = vld [vmem:[#allocation9 + $0x5c] sm:$0xf]
    %v453 = vld [vmem:[#allocation9 + $0x60] sm:$0xf]
    %v454 = vld [vmem:[#allocation9 + $0x64] sm:$0xf]
    %v455 = vld [vmem:[#allocation9 + $0x68] sm:$0xf]
    %v456 = vld [vmem:[#allocation9 + $0x6c] sm:$0xf]
    %v457 = vld [vmem:[#allocation9 + $0x70] sm:$0xf]
    %v458 = vld [vmem:[#allocation9 + $0x74] sm:$0xf]
    %v459 = vld [vmem:[#allocation9 + $0x78] sm:$0xf]
    %v460 = vld [vmem:[#allocation9 + $0x7c] sm:$0xf]
    %v493 = vunpack.c.l.b16 %v429
    %v494 = vunpack.c.l.b16 %v430
    %v495 = vunpack.c.l.b16 %v431
    %v496 = vunpack.c.l.b16 %v432
    %v497 = vunpack.c.l.b16 %v433
    %v498 = vunpack.c.l.b16 %v434
    %v499 = vunpack.c.l.b16 %v435
    %v500 = vunpack.c.l.b16 %v436
    %v501 = vunpack.c.l.b16 %v437
    %v502 = vunpack.c.l.b16 %v438
    %v503 = vunpack.c.l.b16 %v439
    %v504 = vunpack.c.l.b16 %v440
    %v505 = vunpack.c.l.b16 %v441
    %v506 = vunpack.c.l.b16 %v442
    %v507 = vunpack.c.l.b16 %v443
    %v508 = vunpack.c.l.b16 %v444
    %v509 = vunpack.c.l.b16 %v445
    %v510 = vunpack.c.l.b16 %v446
    %v511 = vunpack.c.l.b16 %v447
    %v512 = vunpack.c.l.b16 %v448
    %v513 = vunpack.c.l.b16 %v449
    %v514 = vunpack.c.l.b16 %v450
    %v515 = vunpack.c.l.b16 %v451
    %v516 = vunpack.c.l.b16 %v452
    %v517 = vunpack.c.l.b16 %v453
    %v518 = vunpack.c.l.b16 %v454
    %v519 = vunpack.c.l.b16 %v455
    %v520 = vunpack.c.l.b16 %v456
    %v521 = vunpack.c.l.b16 %v457
    %v522 = vunpack.c.l.b16 %v458
    %v523 = vunpack.c.l.b16 %v459
    %v524 = vunpack.c.l.b16 %v460
    %v525 = vpack.c.b16 %v494, %v493
    %v526 = vpack.c.b16 %v496, %v495
    %v527 = vpack.c.b16 %v498, %v497
    %v528 = vpack.c.b16 %v500, %v499
    %v529 = vpack.c.b16 %v502, %v501
    %v530 = vpack.c.b16 %v504, %v503
    %v531 = vpack.c.b16 %v506, %v505
    %v532 = vpack.c.b16 %v508, %v507
    %v533 = vpack.c.b16 %v510, %v509
    %v534 = vpack.c.b16 %v512, %v511
    %v535 = vpack.c.b16 %v514, %v513
    %v536 = vpack.c.b16 %v516, %v515
    %v537 = vpack.c.b16 %v518, %v517
    %v538 = vpack.c.b16 %v520, %v519
    %v539 = vpack.c.b16 %v522, %v521
    %v540 = vpack.c.b16 %v524, %v523
    %557 = vmatprep.subr.bf16.mxu0 0
    %558 = vmatpush1.bf16.msra.mxu0 %v525
    %559 = vmatprep.subr.bf16.mxu0 0
    %560 = vmatpush1.bf16.msra.mxu0 %v526
    %561 = vmatprep.subr.bf16.mxu0 0
    %562 = vmatpush1.bf16.msra.mxu0 %v527
    %563 = vmatprep.subr.bf16.mxu0 0
    %564 = vmatpush1.bf16.msra.mxu0 %v528
    %565 = vmatprep.subr.bf16.mxu0 0
    %566 = vmatpush1.bf16.msra.mxu0 %v529
    %567 = vmatprep.subr.bf16.mxu0 0
    %568 = vmatpush1.bf16.msra.mxu0 %v530
    %569 = vmatprep.subr.bf16.mxu0 0
    %570 = vmatpush1.bf16.msra.mxu0 %v531
    %571 = vmatprep.subr.bf16.mxu0 0
    %572 = vmatpush1.bf16.msra.mxu0 %v532
    %573 = vmatprep.subr.bf16.mxu0 0
    %574 = vmatpush1.bf16.msra.mxu0 %v533
    %575 = vmatprep.subr.bf16.mxu0 0
    %576 = vmatpush1.bf16.msra.mxu0 %v534
    %577 = vmatprep.subr.bf16.mxu0 0
    %578 = vmatpush1.bf16.msra.mxu0 %v535
    %579 = vmatprep.subr.bf16.mxu0 0
    %580 = vmatpush1.bf16.msra.mxu0 %v536
    %581 = vmatprep.subr.bf16.mxu0 0
    %582 = vmatpush1.bf16.msra.mxu0 %v537
    %583 = vmatprep.subr.bf16.mxu0 0
    %584 = vmatpush1.bf16.msra.mxu0 %v538
    %585 = vmatprep.subr.bf16.mxu0 0
    %586 = vmatpush1.bf16.msra.mxu0 %v539
    %587 = vmatprep.subr.bf16.mxu0 0
    %588 = vmatpush1.bf16.msra.mxu0 %v540
    %589 = vmatprep.mubr.bf16.mxu0 %v428
    %590 = vmatmul.mubr.bf16.gmra.mrb[0].mxu0 %v427
    %v591 = vpop.f32.mrb[0].mxu0
    %v592 = vadd.f32 %v116, %v591
    %v593 = vpop.f32.mrb[0].mxu0
    %v594 = vpop.f32.mrb[0].mxu0
    %v595 = vadd.f32 %v116, %v594
    %v596 = vpop.f32.mrb[0].mxu0
    %597 = vdwg.mxu0
    %v598 = vpack.c.bf16 %v595, %v592
    %v599 = vld [vmem:[#allocation11] sm:$0xf]
    %v600 = vld [vmem:[#allocation11 + $0x4] sm:$0xf]
    %v601 = vld [vmem:[#allocation11 + $0x8] sm:$0xf]
    %v602 = vld [vmem:[#allocation11 + $0xc] sm:$0xf]
    %v603 = vld [vmem:[#allocation11 + $0x10] sm:$0xf]
    %v604 = vld [vmem:[#allocation11 + $0x14] sm:$0xf]
    %v605 = vld [vmem:[#allocation11 + $0x18] sm:$0xf]
    %v606 = vld [vmem:[#allocation11 + $0x1c] sm:$0xf]
    %v607 = vld [vmem:[#allocation11 + $0x20] sm:$0xf]
    %v608 = vld [vmem:[#allocation11 + $0x24] sm:$0xf]
    %v609 = vld [vmem:[#allocation11 + $0x28] sm:$0xf]
    %v610 = vld [vmem:[#allocation11 + $0x2c] sm:$0xf]
    %v611 = vld [vmem:[#allocation11 + $0x30] sm:$0xf]
    %v612 = vld [vmem:[#allocation11 + $0x34] sm:$0xf]
    %v613 = vld [vmem:[#allocation11 + $0x38] sm:$0xf]
    %v614 = vld [vmem:[#allocation11 + $0x3c] sm:$0xf]
    %v631 = vunpack.c.l.b16 %v599
    %v632 = vunpack.c.l.b16 %v600
    %v633 = vunpack.c.l.b16 %v601
    %v634 = vunpack.c.l.b16 %v602
    %v635 = vunpack.c.l.b16 %v603
    %v636 = vunpack.c.l.b16 %v604
    %v637 = vunpack.c.l.b16 %v605
    %v638 = vunpack.c.l.b16 %v606
    %v639 = vunpack.c.l.b16 %v607
    %v640 = vunpack.c.l.b16 %v608
    %v641 = vunpack.c.l.b16 %v609
    %v642 = vunpack.c.l.b16 %v610
    %v643 = vunpack.c.l.b16 %v611
    %v644 = vunpack.c.l.b16 %v612
    %v645 = vunpack.c.l.b16 %v613
    %v646 = vunpack.c.l.b16 %v614
    %v647 = vpack.c.b16 %v632, %v631
    %v648 = vpack.c.b16 %v634, %v633
    %v649 = vpack.c.b16 %v636, %v635
    %v650 = vpack.c.b16 %v638, %v637
    %v651 = vpack.c.b16 %v640, %v639
    %v652 = vpack.c.b16 %v642, %v641
    %v653 = vpack.c.b16 %v644, %v643
    %v654 = vpack.c.b16 %v646, %v645
    %663 = vmatprep.subr.bf16.mxu0 0
    %664 = vmatpush1.bf16.msra.mxu0 %v647
    %665 = vmatprep.subr.bf16.mxu0 0
    %666 = vmatpush1.bf16.msra.mxu0 %v648
    %667 = vmatprep.subr.bf16.mxu0 0
    %668 = vmatpush1.bf16.msra.mxu0 %v649
    %669 = vmatprep.subr.bf16.mxu0 0
    %670 = vmatpush1.bf16.msra.mxu0 %v650
    %671 = vmatprep.subr.bf16.mxu0 0
    %672 = vmatpush1.bf16.msra.mxu0 %v651
    %673 = vmatprep.subr.bf16.mxu0 0
    %674 = vmatpush1.bf16.msra.mxu0 %v652
    %675 = vmatprep.subr.bf16.mxu0 0
    %676 = vmatpush1.bf16.msra.mxu0 %v653
    %677 = vmatprep.subr.bf16.mxu0 0
    %678 = vmatpush1.bf16.msra.mxu0 %v654
    %679 = vmatprep.subr.bf16.mxu0 0
    %680 = vmatpush1.bf16.msra.mxu0 0
    %681 = vmatprep.subr.bf16.mxu0 0
    %682 = vmatpush1.bf16.msra.mxu0 0
    %683 = vmatprep.subr.bf16.mxu0 0
    %684 = vmatpush1.bf16.msra.mxu0 0
    %685 = vmatprep.subr.bf16.mxu0 0
    %686 = vmatpush1.bf16.msra.mxu0 0
    %687 = vmatprep.subr.bf16.mxu0 0
    %688 = vmatpush1.bf16.msra.mxu0 0
    %689 = vmatprep.subr.bf16.mxu0 0
    %690 = vmatpush1.bf16.msra.mxu0 0
    %691 = vmatprep.subr.bf16.mxu0 0
    %692 = vmatpush1.bf16.msra.mxu0 0
    %693 = vmatprep.subr.bf16.mxu0 0
    %694 = vmatpush1.bf16.msra.mxu0 0
    %695 = vmatprep.mubr.bf16.mxu0 0
    %696 = vmatmul.mubr.bf16.gmra.mrb[0].mxu0 %v598
    %v697 = vpop.f32.mrb[0].mxu0
    %v698 = vadd.f32 %v117, %v697
    %v699 = vpop.f32.mrb[0].mxu0
    %v700 = vpop.f32.mrb[0].mxu0
    %v701 = vadd.f32 %v117, %v700
    %v702 = vpop.f32.mrb[0].mxu0
    %703 = vdwg.mxu0
    %v704 = vmax.f32 %v698, 0.0
    %v705 = vmax.f32 %v701, 0.0
    %v706 = vpack.c.bf16 %v705, %v704
    %v707 = vld [vmem:[#allocation12] sm:$0xf]
    %v708 = vld [vmem:[#allocation12 + $0x4] sm:$0xf]
    %v709 = vld [vmem:[#allocation12 + $0x8] sm:$0xf]
    %v710 = vld [vmem:[#allocation12 + $0xc] sm:$0xf]
    %v711 = vld [vmem:[#allocation12 + $0x10] sm:$0xf]
    %v712 = vld [vmem:[#allocation12 + $0x14] sm:$0xf]
    %v713 = vld [vmem:[#allocation12 + $0x18] sm:$0xf]
    %v714 = vld [vmem:[#allocation12 + $0x1c] sm:$0xf]
    %v715 = vld [vmem:[#allocation12 + $0x20] sm:$0xf]
    %v716 = vld [vmem:[#allocation12 + $0x24] sm:$0xf]
    %v717 = vld [vmem:[#allocation12 + $0x28] sm:$0xf]
    %v718 = vld [vmem:[#allocation12 + $0x2c] sm:$0xf]
    %v719 = vld [vmem:[#allocation12 + $0x30] sm:$0xf]
    %v720 = vld [vmem:[#allocation12 + $0x34] sm:$0xf]
    %v721 = vld [vmem:[#allocation12 + $0x38] sm:$0xf]
    %v722 = vld [vmem:[#allocation12 + $0x3c] sm:$0xf]
    %v739 = vunpack.c.l.b16 %v707
    %v740 = vunpack.c.l.b16 %v708
    %v741 = vunpack.c.l.b16 %v709
    %v742 = vunpack.c.l.b16 %v710
    %v743 = vunpack.c.l.b16 %v711
    %v744 = vunpack.c.l.b16 %v712
    %v745 = vunpack.c.l.b16 %v713
    %v746 = vunpack.c.l.b16 %v714
    %v747 = vunpack.c.l.b16 %v715
    %v748 = vunpack.c.l.b16 %v716
    %v749 = vunpack.c.l.b16 %v717
    %v750 = vunpack.c.l.b16 %v718
    %v751 = vunpack.c.l.b16 %v719
    %v752 = vunpack.c.l.b16 %v720
    %v753 = vunpack.c.l.b16 %v721
    %v754 = vunpack.c.l.b16 %v722
    %v755 = vpack.c.b16 %v740, %v739
    %v756 = vpack.c.b16 %v742, %v741
    %v757 = vpack.c.b16 %v744, %v743
    %v758 = vpack.c.b16 %v746, %v745
    %v759 = vpack.c.b16 %v748, %v747
    %v760 = vpack.c.b16 %v750, %v749
    %v761 = vpack.c.b16 %v752, %v751
    %v762 = vpack.c.b16 %v754, %v753
    %771 = vmatprep.subr.bf16.mxu0 0
    %772 = vmatpush1.bf16.msra.mxu0 %v755
    %773 = vmatprep.subr.bf16.mxu0 0
    %774 = vmatpush1.bf16.msra.mxu0 %v756
    %775 = vmatprep.subr.bf16.mxu0 0
    %776 = vmatpush1.bf16.msra.mxu0 %v757
    %777 = vmatprep.subr.bf16.mxu0 0
    %778 = vmatpush1.bf16.msra.mxu0 %v758
    %779 = vmatprep.subr.bf16.mxu0 0
    %780 = vmatpush1.bf16.msra.mxu0 %v759
    %781 = vmatprep.subr.bf16.mxu0 0
    %782 = vmatpush1.bf16.msra.mxu0 %v760
    %783 = vmatprep.subr.bf16.mxu0 0
    %784 = vmatpush1.bf16.msra.mxu0 %v761
    %785 = vmatprep.subr.bf16.mxu0 0
    %786 = vmatpush1.bf16.msra.mxu0 %v762
    %787 = vmatprep.subr.bf16.mxu0 0
    %788 = vmatpush1.bf16.msra.mxu0 0
    %789 = vmatprep.subr.bf16.mxu0 0
    %790 = vmatpush1.bf16.msra.mxu0 0
    %791 = vmatprep.subr.bf16.mxu0 0
    %792 = vmatpush1.bf16.msra.mxu0 0
    %793 = vmatprep.subr.bf16.mxu0 0
    %794 = vmatpush1.bf16.msra.mxu0 0
    %795 = vmatprep.subr.bf16.mxu0 0
    %796 = vmatpush1.bf16.msra.mxu0 0
    %797 = vmatprep.subr.bf16.mxu0 0
    %798 = vmatpush1.bf16.msra.mxu0 0
    %799 = vmatprep.subr.bf16.mxu0 0
    %800 = vmatpush1.bf16.msra.mxu0 0
    %801 = vmatprep.subr.bf16.mxu0 0
    %802 = vmatpush1.bf16.msra.mxu0 0
    %803 = vmatprep.mubr.bf16.mxu0 0
    %804 = vmatmul.mubr.bf16.gmra.mrb[0].mxu0 %v706
    %v805 = vpop.f32.mrb[0].mxu0
    %v806 = vadd.f32 %v118, %v805
    %v807 = vpop.f32.mrb[0].mxu0
    %v808 = vpop.f32.mrb[0].mxu0
    %v809 = vadd.f32 %v118, %v808
    %v810 = vpop.f32.mrb[0].mxu0
    %811 = vdwg.mxu0
    %v812 = vsub.f32 0.0, %v806
    %v813 = vsub.f32 0.0, %v809
    %v814 = vmul.f32 %v812, 1.442695
    %v815 = vpow.pop %v814
    %v816 = vmul.f32 %v813, 1.442695
    %v817 = vpow.pop %v816
    %v818 = vadd.f32 %v815, 1.0
    %v819 = vadd.f32 %v817, 1.0
    %v820 = vrcp.pop %v818
    %v821 = vrcp.pop %v819
    %v822 = vmul.f32 %v592, %v820
    %v823 = vmul.f32 %v595, %v821
    %v824 = vld [vmem:[#allocation2] sm:$0xff]
    %v825 = vld [vmem:[#allocation2 + $0x8] sm:$0xff]
    %v826 = vadd.f32 %v822, %v824
    %v827 = vadd.f32 %v823, %v825
    %v828 = vmax.f32 %v826, 0.0
    %v829 = vmax.f32 %v827, 0.0
    %830 = vst [vmem:[#allocation14] sm:$0xff] %v828
    %831 = vst [vmem:[#allocation14 + $0x8] sm:$0xff] %v829
    // Predicated region
    $region54: #{tpu_custom_call.1} parent=1 // pred_check
      _
    $region55: #{tpu_custom_call.1} parent=1 // pred_check_branch
      %833 = sbr.rel (0) target = $region57
    $region56: #{tpu_custom_call.1} parent=1 // pred_region
      %s835 = ssub.s32 256, 256
      %836 = vsyncadd [#allocation5], %s835
      %s837 = sshll.u32 [#allocation14], 4
      %s838 = int_to_ptr.vmem [resolvable:$true] %s837
      %843 = dma.vmem_to_hbm [thread:$0]  %s838, 256, %s7, [#allocation5], 128, 128, 8
    $region57: #{tpu_custom_call.1} parent=1 // pred_fallthru
      _
    // Predicated region
    $region58: #{tpu_custom_call.1} parent=1 // pred_check
      _
    $region59: #{tpu_custom_call.1} parent=1 // pred_check_branch
      %845 = sbr.rel (0) target = $region61
    $region60: #{tpu_custom_call.1} parent=1 // pred_region
      %846 = dma.done [#allocation5], 256
    $region61: #{tpu_custom_call.1} parent=1 // pred_fallthru
      _
    %847 = vsyncpa [#allocation4], 1
    %848 = vsyncpa [#allocation7], 1
    %849 = vsyncpa [#allocation10], 1
    %850 = vsyncpa [#allocation13], 1
    %851 = vsyncpa [#allocation5], 1

</llo_original>
